<compile_context>
chip_gen: v6e
topology: v6e:2x2x1
jax: 0.10.0
libtpu: 0.0.40
codegen_flags: <defaults>
</compile_context>

<pallas_src>
import functools

import jax
import jax.numpy as jnp
import numpy as np
from jax.experimental import pallas as pl
from jax.experimental.pallas import tpu as pltpu


# ----------------------------------------------------------------------------
# Fused kernel: one batch element per grid step.
# ----------------------------------------------------------------------------
def _sam_fused_kernel(x_ref, cmat_ref, b1_ref, w2g_ref, b2_ref, mask_ref, o_ref,
                      *, groups, g_pad, ga2, H, W):
    # x_ref   : (1, C, HW)            input, flat spatial (lane-dense)
    # cmat_ref: (G_pad + G*9, C)      [group-sum matrix ; pad ; conv1 weight (tap-major)]
    # b1_ref  : (G*9, 1)              conv1 bias, tap-major
    # w2g_ref : (9, C, G)             conv2 weights pre-reduced over group channels
    # b2_ref  : (C, 1)                conv2 bias
    # mask_ref: (9, HW)               0/1 valid-source masks per 3x3 tap
    # o_ref   : (1, C, HW)
    HW = H * W
    C = x_ref.shape[1]
    xs = x_ref[0]                                                   # (C, HW)

    # One MXU matmul gives both:
    #   rows [0, G)             -> per-group channel sums (xg)
    #   rows [G, g_pad)         -> zero padding (keeps conv1 rows sublane-aligned)
    #   rows [g_pad, g_pad+G*9) -> conv1(1x1) applied per pixel (averaged below).
    y = jnp.dot(cmat_ref[...], xs, preferred_element_type=jnp.float32)
    xg = y[0:groups, :]                                             # (G, HW)
    att_pre = jnp.sum(y[g_pad:g_pad + ga2, :], axis=1, keepdims=True) * (1.0 / HW)
    att = jnp.tanh(att_pre + b1_ref[...])                           # (G*9, 1) tap-major

    masks = mask_ref[...]                                           # (9, HW)

    # --- grouped attention conv (padding=1) in flat layout -------------------
    # shifted window for tap k: static lane slice of the doubled array + border
    # mask == zero-padded 3x3 window.
    xg2 = jnp.concatenate([xg, xg], axis=1)                         # (G, 2*HW)
    s_g = jnp.zeros((groups, HW), jnp.float32)
    for k in range(9):
        off = (k // 3 - 1) * W + (k % 3 - 1)
        a_k = att[k * groups:(k + 1) * groups, :]                   # (G, 1)
        if off == 0:
            s_g = s_g + xg * a_k
        else:
            s = off % HW
            win = xg2[:, s:s + HW] * masks[k:k + 1, :]
            s_g = s_g + win * a_k

    # --- conv2 (3x3, padding=1, bias): 9 accumulated MXU matmuls -------------
    sg2 = jnp.concatenate([s_g, s_g], axis=1)                       # (G, 2*HW)
    acc = jnp.zeros((C, HW), jnp.float32) + b2_ref[...]             # (C, HW)
    for k in range(9):
        off = (k // 3 - 1) * W + (k % 3 - 1)
        if off == 0:
            win = s_g
        else:
            s = off % HW
            win = sg2[:, s:s + HW] * masks[k:k + 1, :]
        acc = acc + jnp.dot(w2g_ref[k], win, preferred_element_type=jnp.float32)

    o_ref[0] = acc


# ----------------------------------------------------------------------------
# Wrapper: parameter preparation (tiny tensors) + pallas_call.
# ----------------------------------------------------------------------------
def sam_forward(x, params, *, groups, att_size):
    B, C, H, W = x.shape
    assert C % groups == 0, "channels must be divisible by groups"
    assert att_size == 3, "PyTorch module hard-codes padding=1 -> attention_size must be 3"
    gs = C // groups
    A = att_size
    HW = H * W
    GA2 = groups * A * A
    G_pad = ((groups + 7) // 8) * 8            # sublane-align the conv1 rows

    w1 = params["w1"].astype(jnp.float32)      # (G*A*A, C)
    b1 = params["b1"].astype(jnp.float32)      # (G*A*A,)
    w2 = params["w2"].astype(jnp.float32)      # (C, C, 3, 3)
    b2 = params["b2"].astype(jnp.float32)      # (C,)

    # conv1 weights reordered tap-major / group-minor and stacked under the
    # group-sum matrix so a single MXU matmul yields both xg and the conv1 map.
    w1_tap_major = jnp.transpose(w1.reshape(groups, A * A, C), (1, 0, 2)).reshape(GA2, C)
    b1_tap_major = jnp.transpose(b1.reshape(groups, A * A), (1, 0)).reshape(GA2, 1)
    gmat = jnp.repeat(jnp.eye(groups, dtype=jnp.float32), gs, axis=1)       # (G, C)
    pad = jnp.zeros((G_pad - groups, C), jnp.float32)
    cmat = jnp.concatenate([gmat, pad, w1_tap_major], axis=0)               # (G_pad+GA2, C)

    # conv2 weights pre-reduced over each group's input channels (S is
    # identical across channels inside a group) -> contraction over G only.
    w2g = w2.reshape(C, groups, gs, 3, 3).sum(axis=2)                       # (C, G, 3, 3)
    w2g_k = jnp.transpose(w2g, (2, 3, 0, 1)).reshape(9, C, groups)          # (9, C, G)
    b2_col = b2.reshape(C, 1)

    # 0/1 masks of valid (non-padding) source pixels for each 3x3 tap.
    yy = np.arange(H).reshape(H, 1)
    xx = np.arange(W).reshape(1, W)
    masks_np = np.zeros((9, HW), np.float32)
    for kh in range(3):
        for kw in range(3):
            valid = ((yy + kh - 1 >= 0) & (yy + kh - 1 < H) &
                     (xx + kw - 1 >= 0) & (xx + kw - 1 < W))
            masks_np[kh * 3 + kw] = valid.astype(np.float32).reshape(-1)
    masks = jnp.asarray(masks_np)

    x_flat = x.reshape(B, C, HW)               # metadata-only reshape

    kernel = functools.partial(_sam_fused_kernel, groups=groups, g_pad=G_pad,
                               ga2=GA2, H=H, W=W)

    flops = int(B * (2 * (G_pad + GA2) * C * HW     # fused group-sum + conv1 matmul
                     + 9 * 2 * C * groups * HW      # conv2: 9 MXU matmuls
                     + 9 * 3 * groups * HW))        # attention conv FMAs
    bytes_accessed = int(4 * (2 * B * C * HW + (G_pad + GA2) * C + GA2
                              + 9 * C * groups + C + 9 * HW))
    cost = pl.CostEstimate(flops=flops, transcendentals=int(B * GA2),
                           bytes_accessed=bytes_accessed)

    out_flat = pl.pallas_call(
        kernel,
        out_shape=jax.ShapeDtypeStruct((B, C, HW), jnp.float32),
        grid_spec=pltpu.PrefetchScalarGridSpec(
            num_scalar_prefetch=0,
            grid=(B,),
            in_specs=[
                pl.BlockSpec((1, C, HW), lambda b: (b, 0, 0)),
                pl.BlockSpec((G_pad + GA2, C), lambda b: (0, 0)),
                pl.BlockSpec((GA2, 1), lambda b: (0, 0)),
                pl.BlockSpec((9, C, groups), lambda b: (0, 0, 0)),
                pl.BlockSpec((C, 1), lambda b: (0, 0)),
                pl.BlockSpec((9, HW), lambda b: (0, 0)),
            ],
            out_specs=pl.BlockSpec((1, C, HW), lambda b: (b, 0, 0)),
        ),
        compiler_params=pltpu.CompilerParams(dimension_semantics=("parallel",)),
        cost_estimate=cost,
    )(x_flat, cmat, b1_tap_major, w2g_k, b2_col, masks)

    return out_flat.reshape(B, C, H, W)


# ----------------------------------------------------------------------------
# Exact NumPy reference (mirrors the PyTorch forward), float64.
# ----------------------------------------------------------------------------
def sam_reference_np(x, params, *, groups, att_size):
    x = np.asarray(x, np.float64)
    w1 = np.asarray(params["w1"], np.float64)
    b1 = np.asarray(params["b1"], np.float64)
    w2 = np.asarray(params["w2"], np.float64)
    b2 = np.asarray(params["b2"], np.float64)
    B, C, H, W = x.shape
    gs = C // groups
    A = att_size

    means = x.mean(axis=(2, 3))                                     # (B, C)
    att = np.tanh(means @ w1.T + b1).reshape(B, groups, A, A)

    xg = x.reshape(B, groups, gs, H, W).sum(axis=2)                 # (B, G, H, W)
    xg_pad = np.pad(xg, ((0, 0), (0, 0), (1, 1), (1, 1)))
    s_g = np.zeros((B, groups, H, W))
    for dh in range(A):
        for dw in range(A):
            s_g += xg_pad[:, :, dh:dh + H, dw:dw + W] * att[:, :, dh, dw][:, :, None, None]
    S = np.repeat(s_g, gs, axis=1)                                  # (B, C, H, W)

    S_pad = np.pad(S, ((0, 0), (0, 0), (1, 1), (1, 1)))
    out = np.zeros((B, C, H, W)) + b2[None, :, None, None]
    for dh in range(3):
        for dw in range(3):
            out += np.einsum('oi,bihw->bohw', w2[:, :, dh, dw],
                             S_pad[:, :, dh:dh + H, dw:dw + W])
    return out


if __name__ == "__main__":
    B, C, H, W = 2, 4, 16, 16
    groups, att_size = 2, 3
    GA2 = groups * att_size ** 2

    key = jax.random.PRNGKey(0)
    k1, k2, k3, k4, k5 = jax.random.split(key, 5)
    params = {
        "w1": jax.random.normal(k1, (GA2, C), jnp.float32) * 0.3,
        "b1": jax.random.normal(k2, (GA2,), jnp.float32) * 0.1,
        "w2": jax.random.normal(k3, (C, C, 3, 3), jnp.float32) * 0.2,
        "b2": jax.random.normal(k4, (C,), jnp.float32) * 0.1,
    }
    x = jax.random.normal(k5, (B, C, H, W), jnp.float32)

    out = jax.block_until_ready(
        sam_forward(x, params, groups=groups, att_size=att_size))
    ref = sam_reference_np(np.asarray(x),
                           {k: np.asarray(v) for k, v in params.items()},
                           groups=groups, att_size=att_size)

    # Tolerance allows for the MXU's reduced-precision f32 passes in the
    # in-kernel matmuls (reference is exact float64).
    np.testing.assert_allclose(np.asarray(out), ref, rtol=1e-2, atol=1e-2)
    print("KERNEL_OK")
</pallas_src>

<mosaic_0001>
module attributes {stable_mosaic.version = 11 : i64} {
  func.func @_sam_fused_kernel(%arg0: i32, %arg1: memref<1x4x256xf32, #tpu.memory_space<vmem>>, %arg2: memref<26x4xf32, #tpu.memory_space<vmem>>, %arg3: memref<18x1xf32, #tpu.memory_space<vmem>>, %arg4: memref<9x4x2xf32, #tpu.memory_space<vmem>>, %arg5: memref<4x1xf32, #tpu.memory_space<vmem>>, %arg6: memref<9x256xf32, #tpu.memory_space<vmem>>, %arg7: memref<1x4x256xf32, #tpu.memory_space<vmem>>) attributes {dimension_semantics = [#tpu.dimension_semantics<parallel>], iteration_bounds = array<i64: 2>, scalar_prefetch = 0 : i64, scratch_operands = 0 : i64, tpu.core_type = #tpu.core_type<tc>, window_params = [{transform_indices = @transform_0, window_bounds = array<i64: 1, 4, 256>}, {pipeline_mode = #tpu.pipeline_mode<synchronous>, transform_indices = @transform_1, window_bounds = array<i64: 26, 4>}, {pipeline_mode = #tpu.pipeline_mode<synchronous>, transform_indices = @transform_2, window_bounds = array<i64: 18, 1>}, {pipeline_mode = #tpu.pipeline_mode<synchronous>, transform_indices = @transform_3, window_bounds = array<i64: 9, 4, 2>}, {pipeline_mode = #tpu.pipeline_mode<synchronous>, transform_indices = @transform_4, window_bounds = array<i64: 4, 1>}, {pipeline_mode = #tpu.pipeline_mode<synchronous>, transform_indices = @transform_5, window_bounds = array<i64: 9, 256>}, {transform_indices = @transform_6, window_bounds = array<i64: 1, 4, 256>}]} {
    %c0 = arith.constant 0 : index
    %c0_0 = arith.constant 0 : index
    %c0_1 = arith.constant 0 : index
    %0 = vector.load %arg1[%c0, %c0_0, %c0_1] : memref<1x4x256xf32, #tpu.memory_space<vmem>>, vector<1x4x256xf32>
    %1 = vector.shape_cast %0 : vector<1x4x256xf32> to vector<4x256xf32>
    %c0_2 = arith.constant 0 : index
    %c0_3 = arith.constant 0 : index
    %2 = vector.load %arg2[%c0_2, %c0_3] : memref<26x4xf32, #tpu.memory_space<vmem>>, vector<26x4xf32>
    %cst = arith.constant dense<0.000000e+00> : vector<26x256xf32>
    %3 = tpu.matmul %2, %1, %cst {dimension_numbers = #tpu.dot_dimension_numbers<[1], [0], [0], [1], [0, 0, 1, 1], [], []>} : vector<26x4xf32>, vector<4x256xf32>, vector<26x256xf32> -> vector<26x256xf32>
    %4 = vector.extract_strided_slice %3 {offsets = [0, 0], sizes = [2, 256], strides = [1, 1]} : vector<26x256xf32> to vector<2x256xf32>
    %5 = vector.extract_strided_slice %3 {offsets = [8, 0], sizes = [18, 256], strides = [1, 1]} : vector<26x256xf32> to vector<18x256xf32>
    %cst_4 = arith.constant dense<0.000000e+00> : vector<18xf32>
    %6 = vector.multi_reduction <add>, %5, %cst_4 [1] : vector<18x256xf32> to vector<18xf32>
    %7 = vector.shape_cast %6 : vector<18xf32> to vector<18x1xf32>
    %cst_5 = arith.constant 3.906250e-03 : f32
    %8 = vector.broadcast %cst_5 : f32 to vector<18x1xf32>
    %9 = arith.mulf %7, %8 : vector<18x1xf32>
    %c0_6 = arith.constant 0 : index
    %c0_7 = arith.constant 0 : index
    %10 = vector.load %arg3[%c0_6, %c0_7] : memref<18x1xf32, #tpu.memory_space<vmem>>, vector<18x1xf32>
    %11 = arith.addf %9, %10 : vector<18x1xf32>
    %12 = math.tanh %11 : vector<18x1xf32>
    %c0_8 = arith.constant 0 : index
    %c0_9 = arith.constant 0 : index
    %13 = vector.load %arg6[%c0_8, %c0_9] : memref<9x256xf32, #tpu.memory_space<vmem>>, vector<9x256xf32>
    %14 = tpu.concatenate %4, %4 in 1 : vector<2x256xf32>, vector<2x256xf32> -> vector<2x512xf32>
    %cst_10 = arith.constant 0.000000e+00 : f32
    %15 = vector.broadcast %cst_10 : f32 to vector<2x256xf32>
    %16 = vector.extract_strided_slice %12 {offsets = [0, 0], sizes = [2, 1], strides = [1, 1]} : vector<18x1xf32> to vector<2x1xf32>
    %17 = vector.extract_strided_slice %14 {offsets = [0, 239], sizes = [2, 256], strides = [1, 1]} : vector<2x512xf32> to vector<2x256xf32>
    %18 = vector.extract_strided_slice %13 {offsets = [0, 0], sizes = [1, 256], strides = [1, 1]} : vector<9x256xf32> to vector<1x256xf32>
    %19 = vector.broadcast %18 : vector<1x256xf32> to vector<2x256xf32>
    %20 = arith.mulf %17, %19 : vector<2x256xf32>
    %21 = vector.broadcast %16 : vector<2x1xf32> to vector<2x256xf32>
    %22 = arith.mulf %20, %21 : vector<2x256xf32>
    %23 = arith.addf %15, %22 : vector<2x256xf32>
    %24 = vector.extract_strided_slice %12 {offsets = [2, 0], sizes = [2, 1], strides = [1, 1]} : vector<18x1xf32> to vector<2x1xf32>
    %25 = vector.extract_strided_slice %14 {offsets = [0, 240], sizes = [2, 256], strides = [1, 1]} : vector<2x512xf32> to vector<2x256xf32>
    %26 = vector.extract_strided_slice %13 {offsets = [1, 0], sizes = [1, 256], strides = [1, 1]} : vector<9x256xf32> to vector<1x256xf32>
    %27 = vector.broadcast %26 : vector<1x256xf32> to vector<2x256xf32>
    %28 = arith.mulf %25, %27 : vector<2x256xf32>
    %29 = vector.broadcast %24 : vector<2x1xf32> to vector<2x256xf32>
    %30 = arith.mulf %28, %29 : vector<2x256xf32>
    %31 = arith.addf %23, %30 : vector<2x256xf32>
    %32 = vector.extract_strided_slice %12 {offsets = [4, 0], sizes = [2, 1], strides = [1, 1]} : vector<18x1xf32> to vector<2x1xf32>
    %33 = vector.extract_strided_slice %14 {offsets = [0, 241], sizes = [2, 256], strides = [1, 1]} : vector<2x512xf32> to vector<2x256xf32>
    %34 = vector.extract_strided_slice %13 {offsets = [2, 0], sizes = [1, 256], strides = [1, 1]} : vector<9x256xf32> to vector<1x256xf32>
    %35 = vector.broadcast %34 : vector<1x256xf32> to vector<2x256xf32>
    %36 = arith.mulf %33, %35 : vector<2x256xf32>
    %37 = vector.broadcast %32 : vector<2x1xf32> to vector<2x256xf32>
    %38 = arith.mulf %36, %37 : vector<2x256xf32>
    %39 = arith.addf %31, %38 : vector<2x256xf32>
    %40 = vector.extract_strided_slice %12 {offsets = [6, 0], sizes = [2, 1], strides = [1, 1]} : vector<18x1xf32> to vector<2x1xf32>
    %41 = vector.extract_strided_slice %14 {offsets = [0, 255], sizes = [2, 256], strides = [1, 1]} : vector<2x512xf32> to vector<2x256xf32>
    %42 = vector.extract_strided_slice %13 {offsets = [3, 0], sizes = [1, 256], strides = [1, 1]} : vector<9x256xf32> to vector<1x256xf32>
    %43 = vector.broadcast %42 : vector<1x256xf32> to vector<2x256xf32>
    %44 = arith.mulf %41, %43 : vector<2x256xf32>
    %45 = vector.broadcast %40 : vector<2x1xf32> to vector<2x256xf32>
    %46 = arith.mulf %44, %45 : vector<2x256xf32>
    %47 = arith.addf %39, %46 : vector<2x256xf32>
    %48 = vector.extract_strided_slice %12 {offsets = [8, 0], sizes = [2, 1], strides = [1, 1]} : vector<18x1xf32> to vector<2x1xf32>
    %49 = vector.broadcast %48 : vector<2x1xf32> to vector<2x256xf32>
    %50 = arith.mulf %4, %49 : vector<2x256xf32>
    %51 = arith.addf %47, %50 : vector<2x256xf32>
    %52 = vector.extract_strided_slice %12 {offsets = [10, 0], sizes = [2, 1], strides = [1, 1]} : vector<18x1xf32> to vector<2x1xf32>
    %53 = vector.extract_strided_slice %14 {offsets = [0, 1], sizes = [2, 256], strides = [1, 1]} : vector<2x512xf32> to vector<2x256xf32>
    %54 = vector.extract_strided_slice %13 {offsets = [5, 0], sizes = [1, 256], strides = [1, 1]} : vector<9x256xf32> to vector<1x256xf32>
    %55 = vector.broadcast %54 : vector<1x256xf32> to vector<2x256xf32>
    %56 = arith.mulf %53, %55 : vector<2x256xf32>
    %57 = vector.broadcast %52 : vector<2x1xf32> to vector<2x256xf32>
    %58 = arith.mulf %56, %57 : vector<2x256xf32>
    %59 = arith.addf %51, %58 : vector<2x256xf32>
    %60 = vector.extract_strided_slice %12 {offsets = [12, 0], sizes = [2, 1], strides = [1, 1]} : vector<18x1xf32> to vector<2x1xf32>
    %61 = vector.extract_strided_slice %14 {offsets = [0, 15], sizes = [2, 256], strides = [1, 1]} : vector<2x512xf32> to vector<2x256xf32>
    %62 = vector.extract_strided_slice %13 {offsets = [6, 0], sizes = [1, 256], strides = [1, 1]} : vector<9x256xf32> to vector<1x256xf32>
    %63 = vector.broadcast %62 : vector<1x256xf32> to vector<2x256xf32>
    %64 = arith.mulf %61, %63 : vector<2x256xf32>
    %65 = vector.broadcast %60 : vector<2x1xf32> to vector<2x256xf32>
    %66 = arith.mulf %64, %65 : vector<2x256xf32>
    %67 = arith.addf %59, %66 : vector<2x256xf32>
    %68 = vector.extract_strided_slice %12 {offsets = [14, 0], sizes = [2, 1], strides = [1, 1]} : vector<18x1xf32> to vector<2x1xf32>
    %69 = vector.extract_strided_slice %14 {offsets = [0, 16], sizes = [2, 256], strides = [1, 1]} : vector<2x512xf32> to vector<2x256xf32>
    %70 = vector.extract_strided_slice %13 {offsets = [7, 0], sizes = [1, 256], strides = [1, 1]} : vector<9x256xf32> to vector<1x256xf32>
    %71 = vector.broadcast %70 : vector<1x256xf32> to vector<2x256xf32>
    %72 = arith.mulf %69, %71 : vector<2x256xf32>
    %73 = vector.broadcast %68 : vector<2x1xf32> to vector<2x256xf32>
    %74 = arith.mulf %72, %73 : vector<2x256xf32>
    %75 = arith.addf %67, %74 : vector<2x256xf32>
    %76 = vector.extract_strided_slice %12 {offsets = [16, 0], sizes = [2, 1], strides = [1, 1]} : vector<18x1xf32> to vector<2x1xf32>
    %77 = vector.extract_strided_slice %14 {offsets = [0, 17], sizes = [2, 256], strides = [1, 1]} : vector<2x512xf32> to vector<2x256xf32>
    %78 = vector.extract_strided_slice %13 {offsets = [8, 0], sizes = [1, 256], strides = [1, 1]} : vector<9x256xf32> to vector<1x256xf32>
    %79 = vector.broadcast %78 : vector<1x256xf32> to vector<2x256xf32>
    %80 = arith.mulf %77, %79 : vector<2x256xf32>
    %81 = vector.broadcast %76 : vector<2x1xf32> to vector<2x256xf32>
    %82 = arith.mulf %80, %81 : vector<2x256xf32>
    %83 = arith.addf %75, %82 : vector<2x256xf32>
    %84 = tpu.concatenate %83, %83 in 1 : vector<2x256xf32>, vector<2x256xf32> -> vector<2x512xf32>
    %cst_11 = arith.constant 0.000000e+00 : f32
    %85 = vector.broadcast %cst_11 : f32 to vector<4x256xf32>
    %c0_12 = arith.constant 0 : index
    %c0_13 = arith.constant 0 : index
    %86 = vector.load %arg5[%c0_12, %c0_13] : memref<4x1xf32, #tpu.memory_space<vmem>>, vector<4x1xf32>
    %87 = vector.broadcast %86 : vector<4x1xf32> to vector<4x256xf32>
    %88 = arith.addf %85, %87 : vector<4x256xf32>
    %89 = vector.extract_strided_slice %84 {offsets = [0, 239], sizes = [2, 256], strides = [1, 1]} : vector<2x512xf32> to vector<2x256xf32>
    %90 = vector.extract_strided_slice %13 {offsets = [0, 0], sizes = [1, 256], strides = [1, 1]} : vector<9x256xf32> to vector<1x256xf32>
    %91 = vector.broadcast %90 : vector<1x256xf32> to vector<2x256xf32>
    %92 = arith.mulf %89, %91 : vector<2x256xf32>
    %c0_14 = arith.constant 0 : index
    %c0_15 = arith.constant 0 : index
    %c0_16 = arith.constant 0 : index
    %93 = vector.load %arg4[%c0_14, %c0_15, %c0_16] : memref<9x4x2xf32, #tpu.memory_space<vmem>>, vector<1x4x2xf32>
    %94 = vector.shape_cast %93 : vector<1x4x2xf32> to vector<4x2xf32>
    %cst_17 = arith.constant dense<0.000000e+00> : vector<4x256xf32>
    %95 = tpu.matmul %94, %92, %cst_17 {dimension_numbers = #tpu.dot_dimension_numbers<[1], [0], [0], [1], [0, 0, 1, 1], [], []>} : vector<4x2xf32>, vector<2x256xf32>, vector<4x256xf32> -> vector<4x256xf32>
    %96 = arith.addf %88, %95 : vector<4x256xf32>
    %97 = vector.extract_strided_slice %84 {offsets = [0, 240], sizes = [2, 256], strides = [1, 1]} : vector<2x512xf32> to vector<2x256xf32>
    %98 = vector.extract_strided_slice %13 {offsets = [1, 0], sizes = [1, 256], strides = [1, 1]} : vector<9x256xf32> to vector<1x256xf32>
    %99 = vector.broadcast %98 : vector<1x256xf32> to vector<2x256xf32>
    %100 = arith.mulf %97, %99 : vector<2x256xf32>
    %c1 = arith.constant 1 : index
    %c0_18 = arith.constant 0 : index
    %c0_19 = arith.constant 0 : index
    %101 = vector.load %arg4[%c1, %c0_18, %c0_19] : memref<9x4x2xf32, #tpu.memory_space<vmem>>, vector<1x4x2xf32>
    %102 = vector.shape_cast %101 : vector<1x4x2xf32> to vector<4x2xf32>
    %cst_20 = arith.constant dense<0.000000e+00> : vector<4x256xf32>
    %103 = tpu.matmul %102, %100, %cst_20 {dimension_numbers = #tpu.dot_dimension_numbers<[1], [0], [0], [1], [0, 0, 1, 1], [], []>} : vector<4x2xf32>, vector<2x256xf32>, vector<4x256xf32> -> vector<4x256xf32>
    %104 = arith.addf %96, %103 : vector<4x256xf32>
    %105 = vector.extract_strided_slice %84 {offsets = [0, 241], sizes = [2, 256], strides = [1, 1]} : vector<2x512xf32> to vector<2x256xf32>
    %106 = vector.extract_strided_slice %13 {offsets = [2, 0], sizes = [1, 256], strides = [1, 1]} : vector<9x256xf32> to vector<1x256xf32>
    %107 = vector.broadcast %106 : vector<1x256xf32> to vector<2x256xf32>
    %108 = arith.mulf %105, %107 : vector<2x256xf32>
    %c2 = arith.constant 2 : index
    %c0_21 = arith.constant 0 : index
    %c0_22 = arith.constant 0 : index
    %109 = vector.load %arg4[%c2, %c0_21, %c0_22] : memref<9x4x2xf32, #tpu.memory_space<vmem>>, vector<1x4x2xf32>
    %110 = vector.shape_cast %109 : vector<1x4x2xf32> to vector<4x2xf32>
    %cst_23 = arith.constant dense<0.000000e+00> : vector<4x256xf32>
    %111 = tpu.matmul %110, %108, %cst_23 {dimension_numbers = #tpu.dot_dimension_numbers<[1], [0], [0], [1], [0, 0, 1, 1], [], []>} : vector<4x2xf32>, vector<2x256xf32>, vector<4x256xf32> -> vector<4x256xf32>
    %112 = arith.addf %104, %111 : vector<4x256xf32>
    %113 = vector.extract_strided_slice %84 {offsets = [0, 255], sizes = [2, 256], strides = [1, 1]} : vector<2x512xf32> to vector<2x256xf32>
    %114 = vector.extract_strided_slice %13 {offsets = [3, 0], sizes = [1, 256], strides = [1, 1]} : vector<9x256xf32> to vector<1x256xf32>
    %115 = vector.broadcast %114 : vector<1x256xf32> to vector<2x256xf32>
    %116 = arith.mulf %113, %115 : vector<2x256xf32>
    %c3 = arith.constant 3 : index
    %c0_24 = arith.constant 0 : index
    %c0_25 = arith.constant 0 : index
    %117 = vector.load %arg4[%c3, %c0_24, %c0_25] : memref<9x4x2xf32, #tpu.memory_space<vmem>>, vector<1x4x2xf32>
    %118 = vector.shape_cast %117 : vector<1x4x2xf32> to vector<4x2xf32>
    %cst_26 = arith.constant dense<0.000000e+00> : vector<4x256xf32>
    %119 = tpu.matmul %118, %116, %cst_26 {dimension_numbers = #tpu.dot_dimension_numbers<[1], [0], [0], [1], [0, 0, 1, 1], [], []>} : vector<4x2xf32>, vector<2x256xf32>, vector<4x256xf32> -> vector<4x256xf32>
    %120 = arith.addf %112, %119 : vector<4x256xf32>
    %c4 = arith.constant 4 : index
    %c0_27 = arith.constant 0 : index
    %c0_28 = arith.constant 0 : index
    %121 = vector.load %arg4[%c4, %c0_27, %c0_28] : memref<9x4x2xf32, #tpu.memory_space<vmem>>, vector<1x4x2xf32>
    %122 = vector.shape_cast %121 : vector<1x4x2xf32> to vector<4x2xf32>
    %cst_29 = arith.constant dense<0.000000e+00> : vector<4x256xf32>
    %123 = tpu.matmul %122, %83, %cst_29 {dimension_numbers = #tpu.dot_dimension_numbers<[1], [0], [0], [1], [0, 0, 1, 1], [], []>} : vector<4x2xf32>, vector<2x256xf32>, vector<4x256xf32> -> vector<4x256xf32>
    %124 = arith.addf %120, %123 : vector<4x256xf32>
    %125 = vector.extract_strided_slice %84 {offsets = [0, 1], sizes = [2, 256], strides = [1, 1]} : vector<2x512xf32> to vector<2x256xf32>
    %126 = vector.extract_strided_slice %13 {offsets = [5, 0], sizes = [1, 256], strides = [1, 1]} : vector<9x256xf32> to vector<1x256xf32>
    %127 = vector.broadcast %126 : vector<1x256xf32> to vector<2x256xf32>
    %128 = arith.mulf %125, %127 : vector<2x256xf32>
    %c5 = arith.constant 5 : index
    %c0_30 = arith.constant 0 : index
    %c0_31 = arith.constant 0 : index
    %129 = vector.load %arg4[%c5, %c0_30, %c0_31] : memref<9x4x2xf32, #tpu.memory_space<vmem>>, vector<1x4x2xf32>
    %130 = vector.shape_cast %129 : vector<1x4x2xf32> to vector<4x2xf32>
    %cst_32 = arith.constant dense<0.000000e+00> : vector<4x256xf32>
    %131 = tpu.matmul %130, %128, %cst_32 {dimension_numbers = #tpu.dot_dimension_numbers<[1], [0], [0], [1], [0, 0, 1, 1], [], []>} : vector<4x2xf32>, vector<2x256xf32>, vector<4x256xf32> -> vector<4x256xf32>
    %132 = arith.addf %124, %131 : vector<4x256xf32>
    %133 = vector.extract_strided_slice %84 {offsets = [0, 15], sizes = [2, 256], strides = [1, 1]} : vector<2x512xf32> to vector<2x256xf32>
    %134 = vector.extract_strided_slice %13 {offsets = [6, 0], sizes = [1, 256], strides = [1, 1]} : vector<9x256xf32> to vector<1x256xf32>
    %135 = vector.broadcast %134 : vector<1x256xf32> to vector<2x256xf32>
    %136 = arith.mulf %133, %135 : vector<2x256xf32>
    %c6 = arith.constant 6 : index
    %c0_33 = arith.constant 0 : index
    %c0_34 = arith.constant 0 : index
    %137 = vector.load %arg4[%c6, %c0_33, %c0_34] : memref<9x4x2xf32, #tpu.memory_space<vmem>>, vector<1x4x2xf32>
    %138 = vector.shape_cast %137 : vector<1x4x2xf32> to vector<4x2xf32>
    %cst_35 = arith.constant dense<0.000000e+00> : vector<4x256xf32>
    %139 = tpu.matmul %138, %136, %cst_35 {dimension_numbers = #tpu.dot_dimension_numbers<[1], [0], [0], [1], [0, 0, 1, 1], [], []>} : vector<4x2xf32>, vector<2x256xf32>, vector<4x256xf32> -> vector<4x256xf32>
    %140 = arith.addf %132, %139 : vector<4x256xf32>
    %141 = vector.extract_strided_slice %84 {offsets = [0, 16], sizes = [2, 256], strides = [1, 1]} : vector<2x512xf32> to vector<2x256xf32>
    %142 = vector.extract_strided_slice %13 {offsets = [7, 0], sizes = [1, 256], strides = [1, 1]} : vector<9x256xf32> to vector<1x256xf32>
    %143 = vector.broadcast %142 : vector<1x256xf32> to vector<2x256xf32>
    %144 = arith.mulf %141, %143 : vector<2x256xf32>
    %c7 = arith.constant 7 : index
    %c0_36 = arith.constant 0 : index
    %c0_37 = arith.constant 0 : index
    %145 = vector.load %arg4[%c7, %c0_36, %c0_37] : memref<9x4x2xf32, #tpu.memory_space<vmem>>, vector<1x4x2xf32>
    %146 = vector.shape_cast %145 : vector<1x4x2xf32> to vector<4x2xf32>
    %cst_38 = arith.constant dense<0.000000e+00> : vector<4x256xf32>
    %147 = tpu.matmul %146, %144, %cst_38 {dimension_numbers = #tpu.dot_dimension_numbers<[1], [0], [0], [1], [0, 0, 1, 1], [], []>} : vector<4x2xf32>, vector<2x256xf32>, vector<4x256xf32> -> vector<4x256xf32>
    %148 = arith.addf %140, %147 : vector<4x256xf32>
    %149 = vector.extract_strided_slice %84 {offsets = [0, 17], sizes = [2, 256], strides = [1, 1]} : vector<2x512xf32> to vector<2x256xf32>
    %150 = vector.extract_strided_slice %13 {offsets = [8, 0], sizes = [1, 256], strides = [1, 1]} : vector<9x256xf32> to vector<1x256xf32>
    %151 = vector.broadcast %150 : vector<1x256xf32> to vector<2x256xf32>
    %152 = arith.mulf %149, %151 : vector<2x256xf32>
    %c8 = arith.constant 8 : index
    %c0_39 = arith.constant 0 : index
    %c0_40 = arith.constant 0 : index
    %153 = vector.load %arg4[%c8, %c0_39, %c0_40] : memref<9x4x2xf32, #tpu.memory_space<vmem>>, vector<1x4x2xf32>
    %154 = vector.shape_cast %153 : vector<1x4x2xf32> to vector<4x2xf32>
    %cst_41 = arith.constant dense<0.000000e+00> : vector<4x256xf32>
    %155 = tpu.matmul %154, %152, %cst_41 {dimension_numbers = #tpu.dot_dimension_numbers<[1], [0], [0], [1], [0, 0, 1, 1], [], []>} : vector<4x2xf32>, vector<2x256xf32>, vector<4x256xf32> -> vector<4x256xf32>
    %156 = arith.addf %148, %155 : vector<4x256xf32>
    %c0_42 = arith.constant 0 : index
    %c0_43 = arith.constant 0 : index
    %c0_44 = arith.constant 0 : index
    %157 = vector.load %arg7[%c0_42, %c0_43, %c0_44] : memref<1x4x256xf32, #tpu.memory_space<vmem>>, vector<1x4x256xf32>
    %158 = vector.shape_cast %157 : vector<1x4x256xf32> to vector<4x256xf32>
    %159 = vector.shape_cast %156 : vector<4x256xf32> to vector<1x4x256xf32>
    tpu.vector_store %arg7[%c0_42, %c0_43, %c0_44], %159 {strides = array<i32>} : memref<1x4x256xf32, #tpu.memory_space<vmem>>, vector<1x4x256xf32>,
    return
  }
  func.func @transform_0(%arg0: i32) -> (i32, i32, i32) {
    %c0_i32 = arith.constant 0 : i32
    %c0_i32_0 = arith.constant 0 : i32
    %c0_i32_1 = arith.constant 0 : i32
    return %arg0, %c0_i32, %c0_i32_0 : i32, i32, i32
  }
  func.func @transform_1(%arg0: i32) -> (i32, i32) {
    %c0_i32 = arith.constant 0 : i32
    %c0_i32_0 = arith.constant 0 : i32
    %c0_i32_1 = arith.constant 0 : i32
    return %c0_i32, %c0_i32_0 : i32, i32
  }
  func.func @transform_2(%arg0: i32) -> (i32, i32) {
    %c0_i32 = arith.constant 0 : i32
    %c0_i32_0 = arith.constant 0 : i32
    %c0_i32_1 = arith.constant 0 : i32
    return %c0_i32, %c0_i32_0 : i32, i32
  }
  func.func @transform_3(%arg0: i32) -> (i32, i32, i32) {
    %c0_i32 = arith.constant 0 : i32
    %c0_i32_0 = arith.constant 0 : i32
    %c0_i32_1 = arith.constant 0 : i32
    %c0_i32_2 = arith.constant 0 : i32
    return %c0_i32, %c0_i32_0, %c0_i32_1 : i32, i32, i32
  }
  func.func @transform_4(%arg0: i32) -> (i32, i32) {
    %c0_i32 = arith.constant 0 : i32
    %c0_i32_0 = arith.constant 0 : i32
    %c0_i32_1 = arith.constant 0 : i32
    return %c0_i32, %c0_i32_0 : i32, i32
  }
  func.func @transform_5(%arg0: i32) -> (i32, i32) {
    %c0_i32 = arith.constant 0 : i32
    %c0_i32_0 = arith.constant 0 : i32
    %c0_i32_1 = arith.constant 0 : i32
    return %c0_i32, %c0_i32_0 : i32, i32
  }
  func.func @transform_6(%arg0: i32) -> (i32, i32, i32) {
    %c0_i32 = arith.constant 0 : i32
    %c0_i32_0 = arith.constant 0 : i32
    %c0_i32_1 = arith.constant 0 : i32
    return %arg0, %c0_i32, %c0_i32_0 : i32, i32, i32
  }
}

</mosaic_0001>

<llo_original>
// kernel: tpu_custom_call.1
$region0: #{tpu_custom_call.1}
  #allocation0 [shape = 'u32[]', space=smem, size = 0x4, offset = 0x4, fixed_abs, tag = 'smem constant byte address 0x4 - core index']
  #allocation1 [shape = 'u32[144,128]{1,0:T(1,128)}', space=vmem, size = 0x12000, scoped, tag = 'internal scratch']
  %s0 = inlined_call_operand.vmem [shape: f32[2,4,256], index: 0, kind: input, shape index: {}]
  %s1 = inlined_call_operand.vmem [shape: f32[26,4], index: 1, kind: input, shape index: {}]
  %s2 = inlined_call_operand.vmem [shape: f32[18,1], index: 2, kind: input, shape index: {}]
  %s3 = inlined_call_operand.vmem [shape: f32[9,4,2], index: 3, kind: input, shape index: {}]
  %s4 = inlined_call_operand.vmem [shape: f32[4,1], index: 4, kind: input, shape index: {}]
  %s5 = inlined_call_operand.vmem [shape: f32[9,256], index: 5, kind: input, shape index: {}]
  %s6 = inlined_call_operand.hbm [shape: f32[2,4,256], index: 6, kind: output, shape index: {}]
  %s7 = sld [smem:[#allocation0]]
  $region57: #{tpu_custom_call.1} parent=0
    _
  %s9 = ssub.s32 1, %s7
  %s10 = scalar_select 0, %s9, %s7
  $region1: #{tpu_custom_call.1} parent=0
    #allocation2 [shape = 'u8[8192]{0}', space=vmem, size = 0x2000, scoped, tag = 'output window, operand 0']
    #allocation3 [shape = 's32[2]{0}', space=sflag, size = 0x8, scoped, tag = 'scoped memory for tpu_custom_call.1']
    %11 = vsyncpa [#allocation3], 0
    %s12 = scalar_lea.sflag [#allocation3], 1
    %13 = vsyncpa %s12, 0
    loop: start=0, step=1, limit=4
    $region2: #{tpu_custom_call.1} parent=1 // loop_pre_header
      _
    $region3: #{tpu_custom_call.1} parent=1 // loop_header
      %s15 = sphi 0, %s19
      %p16 = scmp.ge.s32.totalorder %s15, 4
      %s25 = sphi 0, %s27
      %s28 = sphi 0, %s25
      %s29 = sphi 0, %s28
      %s45 = sphi 0, %s29
      %s49 = sphi 0, %s49
      %s51 = sphi 0, %s49
      %s52 = sphi 0, %s51
      %s66 = sphi 0, %s52
      %s70 = sphi 0, %s70
      %s72 = sphi 0, %s70
      %s73 = sphi 0, %s72
      %s87 = sphi 0, %s73
      %s91 = sphi 0, %s91
      %s93 = sphi 0, %s91
      %s94 = sphi 0, %s93
      %s108 = sphi 0, %s94
      %s112 = sphi 0, %s112
      %s114 = sphi 0, %s112
      %s115 = sphi 0, %s114
      %s129 = sphi 0, %s115
      %s133 = sphi 0, %s133
      %s135 = sphi 0, %s133
      %s136 = sphi 0, %s135
      %s150 = sphi 0, %s136
      %s156 = sphi 0, %s158
      %s159 = sphi 0, %s156
      %s160 = sphi 0, %s159
      %s176 = sphi 0, %s160
    $region4: #{tpu_custom_call.1} parent=1 // loop_header_branch
      %18 = sbr.rel (%p16) target = $region8
    $region5: #{tpu_custom_call.1} parent=1 // loop_body
      %s20 = ssub.s32 %s15, 1
      %s21 = ssub.s32 %s15, 2
      %s22 = sadd.s32 %s15, 1
      %s23 = ssub.s32 %s15, %s22
      %p24 = scmp.eq.s32.totalorder %s23, 0
      %s26 = sadd.s32 %s25, 1
      %s27 = scalar_select %p24, %s25, %s26
      %p30 = pneg %p24
      %p31 = scmp.eq.s32.totalorder %s15, 1
      %p32 = por %p30, %p31
      %p33 = scmp.ne.s32.totalorder %s25, %s28
      %p34 = scmp.eq.s32.totalorder %s15, 0
      %p35 = por %p33, %p34
      %p36 = scmp.ne.s32.totalorder %s25, %s28
      %p37 = scmp.eq.s32.totalorder %s20, 1
      %p38 = por %p36, %p37
      %p39 = scmp.ne.s32.totalorder %s28, %s29
      %p40 = scmp.eq.s32.totalorder %s20, 0
      %p41 = por %p39, %p40
      %p42 = scmp.ne.s32.totalorder %s28, %s29
      %p43 = scmp.eq.s32.totalorder %s21, 1
      %p44 = por %p42, %p43
      %p46 = scmp.ne.s32.totalorder %s29, %s45
      %p47 = scmp.eq.s32.totalorder %s21, 0
      %p48 = por %p46, %p47
      %s50 = sadd.s32 %s49, 1
      %p53 = scmp.eq.s32.totalorder %s15, 1
      %p54 = scmp.ne.s32.totalorder %s49, %s51
      %p55 = scmp.eq.s32.totalorder %s15, 0
      %p56 = por %p54, %p55
      %p57 = scmp.ne.s32.totalorder %s49, %s51
      %p58 = scmp.eq.s32.totalorder %s20, 1
      %p59 = por %p57, %p58
      %p60 = scmp.ne.s32.totalorder %s51, %s52
      %p61 = scmp.eq.s32.totalorder %s20, 0
      %p62 = por %p60, %p61
      %p63 = scmp.ne.s32.totalorder %s51, %s52
      %p64 = scmp.eq.s32.totalorder %s21, 1
      %p65 = por %p63, %p64
      %p67 = scmp.ne.s32.totalorder %s52, %s66
      %p68 = scmp.eq.s32.totalorder %s21, 0
      %p69 = por %p67, %p68
      %s71 = sadd.s32 %s70, 1
      %p74 = scmp.eq.s32.totalorder %s15, 1
      %p75 = scmp.ne.s32.totalorder %s70, %s72
      %p76 = scmp.eq.s32.totalorder %s15, 0
      %p77 = por %p75, %p76
      %p78 = scmp.ne.s32.totalorder %s70, %s72
      %p79 = scmp.eq.s32.totalorder %s20, 1
      %p80 = por %p78, %p79
      %p81 = scmp.ne.s32.totalorder %s72, %s73
      %p82 = scmp.eq.s32.totalorder %s20, 0
      %p83 = por %p81, %p82
      %p84 = scmp.ne.s32.totalorder %s72, %s73
      %p85 = scmp.eq.s32.totalorder %s21, 1
      %p86 = por %p84, %p85
      %p88 = scmp.ne.s32.totalorder %s73, %s87
      %p89 = scmp.eq.s32.totalorder %s21, 0
      %p90 = por %p88, %p89
      %s92 = sadd.s32 %s91, 1
      %p95 = scmp.eq.s32.totalorder %s15, 1
      %p96 = scmp.ne.s32.totalorder %s91, %s93
      %p97 = scmp.eq.s32.totalorder %s15, 0
      %p98 = por %p96, %p97
      %p99 = scmp.ne.s32.totalorder %s91, %s93
      %p100 = scmp.eq.s32.totalorder %s20, 1
      %p101 = por %p99, %p100
      %p102 = scmp.ne.s32.totalorder %s93, %s94
      %p103 = scmp.eq.s32.totalorder %s20, 0
      %p104 = por %p102, %p103
      %p105 = scmp.ne.s32.totalorder %s93, %s94
      %p106 = scmp.eq.s32.totalorder %s21, 1
      %p107 = por %p105, %p106
      %p109 = scmp.ne.s32.totalorder %s94, %s108
      %p110 = scmp.eq.s32.totalorder %s21, 0
      %p111 = por %p109, %p110
      %s113 = sadd.s32 %s112, 1
      %p116 = scmp.eq.s32.totalorder %s15, 1
      %p117 = scmp.ne.s32.totalorder %s112, %s114
      %p118 = scmp.eq.s32.totalorder %s15, 0
      %p119 = por %p117, %p118
      %p120 = scmp.ne.s32.totalorder %s112, %s114
      %p121 = scmp.eq.s32.totalorder %s20, 1
      %p122 = por %p120, %p121
      %p123 = scmp.ne.s32.totalorder %s114, %s115
      %p124 = scmp.eq.s32.totalorder %s20, 0
      %p125 = por %p123, %p124
      %p126 = scmp.ne.s32.totalorder %s114, %s115
      %p127 = scmp.eq.s32.totalorder %s21, 1
      %p128 = por %p126, %p127
      %p130 = scmp.ne.s32.totalorder %s115, %s129
      %p131 = scmp.eq.s32.totalorder %s21, 0
      %p132 = por %p130, %p131
      %s134 = sadd.s32 %s133, 1
      %p137 = scmp.eq.s32.totalorder %s15, 1
      %p138 = scmp.ne.s32.totalorder %s133, %s135
      %p139 = scmp.eq.s32.totalorder %s15, 0
      %p140 = por %p138, %p139
      %p141 = scmp.ne.s32.totalorder %s133, %s135
      %p142 = scmp.eq.s32.totalorder %s20, 1
      %p143 = por %p141, %p142
      %p144 = scmp.ne.s32.totalorder %s135, %s136
      %p145 = scmp.eq.s32.totalorder %s20, 0
      %p146 = por %p144, %p145
      %p147 = scmp.ne.s32.totalorder %s135, %s136
      %p148 = scmp.eq.s32.totalorder %s21, 1
      %p149 = por %p147, %p148
      %p151 = scmp.ne.s32.totalorder %s136, %s150
      %p152 = scmp.eq.s32.totalorder %s21, 0
      %p153 = por %p151, %p152
      %s154 = ssub.s32 %s15, %s22
      %p155 = scmp.eq.s32.totalorder %s154, 0
      %s157 = sadd.s32 %s156, 1
      %s158 = scalar_select %p155, %s156, %s157
      %p161 = pneg %p155
      %p162 = scmp.eq.s32.totalorder %s15, 1
      %p163 = por %p161, %p162
      %p164 = scmp.ne.s32.totalorder %s156, %s159
      %p165 = scmp.eq.s32.totalorder %s15, 0
      %p166 = por %p164, %p165
      %p167 = scmp.ne.s32.totalorder %s156, %s159
      %p168 = scmp.eq.s32.totalorder %s20, 1
      %p169 = por %p167, %p168
      %p170 = scmp.ne.s32.totalorder %s159, %s160
      %p171 = scmp.eq.s32.totalorder %s20, 0
      %p172 = por %p170, %p171
      %p173 = scmp.ne.s32.totalorder %s159, %s160
      %p174 = scmp.eq.s32.totalorder %s21, 1
      %p175 = por %p173, %p174
      %p177 = scmp.ne.s32.totalorder %s160, %s176
      %p178 = scmp.eq.s32.totalorder %s21, 0
      %p179 = por %p177, %p178
      %p180 = scmp.le.s32.totalorder 1, %s15
      %p181 = scmp.lt.s32.totalorder %s15, 3
      %p182 = pnand %p180, %p181
      %p183 = pneg %p182
      // Predicated region
      $region9: #{tpu_custom_call.1} parent=5 // pred_check
        _
      $region10: #{tpu_custom_call.1} parent=5 // pred_check_branch
        %185 = sbr.rel (%p182) target = $region12
      $region11: #{tpu_custom_call.1} parent=5 // pred_region
        %s186 = ssub.s32 %s15, 1
        // Predicated region
        $region13: #{tpu_custom_call.1} parent=11 // pred_check
          %p187 = pneg %p62
        $region14: #{tpu_custom_call.1} parent=11 // pred_check_branch
          %189 = sbr.rel (%p187) target = $region16
        $region15: #{tpu_custom_call.1} parent=11 // pred_region
          _
        $region16: #{tpu_custom_call.1} parent=11 // pred_fallthru
          _
        // Predicated region
        $region17: #{tpu_custom_call.1} parent=11 // pred_check
          %p190 = pneg %p83
        $region18: #{tpu_custom_call.1} parent=11 // pred_check_branch
          %192 = sbr.rel (%p190) target = $region20
        $region19: #{tpu_custom_call.1} parent=11 // pred_region
          _
        $region20: #{tpu_custom_call.1} parent=11 // pred_fallthru
          _
        // Predicated region
        $region21: #{tpu_custom_call.1} parent=11 // pred_check
          %p193 = pneg %p104
        $region22: #{tpu_custom_call.1} parent=11 // pred_check_branch
          %195 = sbr.rel (%p193) target = $region24
        $region23: #{tpu_custom_call.1} parent=11 // pred_region
          _
        $region24: #{tpu_custom_call.1} parent=11 // pred_fallthru
          _
        // Predicated region
        $region25: #{tpu_custom_call.1} parent=11 // pred_check
          %p196 = pneg %p125
        $region26: #{tpu_custom_call.1} parent=11 // pred_check_branch
          %198 = sbr.rel (%p196) target = $region28
        $region27: #{tpu_custom_call.1} parent=11 // pred_region
          _
        $region28: #{tpu_custom_call.1} parent=11 // pred_fallthru
          _
        // Predicated region
        $region29: #{tpu_custom_call.1} parent=11 // pred_check
          %p199 = pneg %p146
        $region30: #{tpu_custom_call.1} parent=11 // pred_check_branch
          %201 = sbr.rel (%p199) target = $region32
        $region31: #{tpu_custom_call.1} parent=11 // pred_region
          _
        $region32: #{tpu_custom_call.1} parent=11 // pred_fallthru
          _
      $region12: #{tpu_custom_call.1} parent=5 // pred_fallthru
        _
      %p202 = scmp.lt.s32.totalorder %s15, 2
      // Predicated region
      $region33: #{tpu_custom_call.1} parent=5 // pred_check
        %p203 = pneg %p202
      $region34: #{tpu_custom_call.1} parent=5 // pred_check_branch
        %205 = sbr.rel (%p203) target = $region36
      $region35: #{tpu_custom_call.1} parent=5 // pred_region
        // Predicated region
        $region37: #{tpu_custom_call.1} parent=35 // pred_check
          %p206 = pneg %p35
        $region38: #{tpu_custom_call.1} parent=35 // pred_check_branch
          %208 = sbr.rel (%p206) target = $region40
        $region39: #{tpu_custom_call.1} parent=35 // pred_region
          %p209 = scmp.lt.s32.totalorder %s15, 1
          %s210 = scalar_select %p209, %s15, 1
          %s211 = smul.addr %s210, 2
          %s212 = smul.addr %s211, 4
          %s213 = scalar_lea.vmem %s0, %s212
        $region40: #{tpu_custom_call.1} parent=35 // pred_fallthru
          _
      $region36: #{tpu_custom_call.1} parent=5 // pred_fallthru
        _
      %p214 = scmp.le.s32.totalorder 1, %s15
      %p215 = scmp.lt.s32.totalorder %s15, 3
      %p216 = pnand %p214, %p215
      %p217 = pneg %p216
      // Predicated region
      $region41: #{tpu_custom_call.1} parent=5 // pred_check
        _
      $region42: #{tpu_custom_call.1} parent=5 // pred_check_branch
        %219 = sbr.rel (%p216) target = $region44
      $region43: #{tpu_custom_call.1} parent=5 // pred_region
        %s220 = ssub.s32 %s15, 1
        %p221 = scmp.lt.s32.totalorder %s20, 1
        %s222 = scalar_select %p221, %s20, 1
        %s223 = smul.addr %s222, 2
        %s224 = smul.addr %s223, 4
        %s225 = scalar_lea.vmem %s0, %s224
        %p226 = pneg %p41
        %p227 = pneg %p38
        %p228 = pneg %p62
        %p229 = pneg %p59
        %p230 = pneg %p83
        %p231 = pneg %p80
        %p232 = pneg %p104
        %p233 = pneg %p101
        %p234 = pneg %p125
        %p235 = pneg %p122
        %p236 = pneg %p146
        %p237 = pneg %p143
        %p238 = pneg %p172
        %p239 = pneg %p169
        %s240 = sand.u32 %s159, 1
        %s241 = scalar_lea.sflag [#allocation3], %s240
        %s242 = sand.u32 %s159, 1
        %s243 = smul.addr %s242, 8
        %s244 = scalar_lea.vmem [#allocation2], %s243
        %p245 = scmp.lt.s32.totalorder %s20, 1
        %s246 = scalar_select %p245, %s20, 1
        %s247 = smul.addr %s246, 2
        %s248 = smul.addr %s247, 4
        %s249 = scalar_lea.vmem %s0, %s248
        %v250 = vld [vmem:[%s249] sm:$0xff]
        %v251 = vld [vmem:[%s1] sm:$0xff]
        %v252 = vld [vmem:[%s1 + $0x8] sm:$0xff]
        %v253 = vld [vmem:[%s1 + $0x10] sm:$0xff]
        %v254 = vld [vmem:[%s1 + $0x18] sm:$0x3]
        %v256 = vcombine.high %v250, %v250
        %vm257 = vcmask 31744
        %v259 = vsel %vm257, %v251, 0
        %v262 = vsel %vm257, %v252, 0
        %v265 = vsel %vm257, %v253, 0
        %v268 = vsel %vm257, %v254, 0
        %vm270 = vcmask 1043456
        %v271 = vsel %vm270, %v250, 0
        %v273 = vsel %vm270, %v256, 0
        %275 = vmatprep.subr.mxu0 0.0
        %276 = vmatpush1.msra.mxu0 0.0
        %277 = vmatprep.subr.mxu0 0.0
        %278 = vmatpush1.msra.mxu0 0.0
        %279 = vmatprep.subr.mxu0 0.0
        %280 = vmatpush1.msra.mxu0 0.0
        %281 = vmatprep.subr.mxu0 0.0
        %282 = vmatpush1.msra.mxu0 0.0
        %283 = vmatprep.subr.mxu0 0.0
        %284 = vmatpush1.msra.mxu0 0.0
        %285 = vmatprep.subr.mxu0 0.0
        %286 = vmatpush1.msra.mxu0 0.0
        %287 = vmatprep.subr.mxu0 0.0
        %288 = vmatpush1.msra.mxu0 0.0
        %289 = vmatprep.subr.mxu0 0.0
        %290 = vmatpush1.msra.mxu0 0.0
        %291 = vmatprep.subr.mxu0 0.0
        %292 = vmatpush1.msra.mxu0 0.0
        %293 = vmatprep.subr.mxu0 0.0
        %294 = vmatpush1.msra.mxu0 0.0
        %295 = vmatprep.subr.mxu0 0.0
        %296 = vmatpush1.msra.mxu0 0.0
        %297 = vmatprep.subr.mxu0 0.0
        %298 = vmatpush1.msra.mxu0 0.0
        %299 = vmatprep.subr.mxu0 0.0
        %300 = vmatpush1.msra.mxu0 0.0
        %301 = vmatprep.subr.mxu0 0.0
        %302 = vmatpush1.msra.mxu0 0.0
        %303 = vmatprep.subr.mxu0 0.0
        %304 = vmatpush1.msra.mxu0 0.0
        %305 = vmatprep.subr.mxu0 %v273
        %306 = vmatpush1.msra.mxu0 %v271
        %307 = vmatprep.subr.mxu0 0.0
        %308 = vmatpush2.msra.mxu0 0.0
        %309 = vmatprep.subr.mxu0 0.0
        %310 = vmatpush2.msra.mxu0 0.0
        %311 = vmatprep.subr.mxu0 0.0
        %312 = vmatpush2.msra.mxu0 0.0
        %313 = vmatprep.subr.mxu0 0.0
        %314 = vmatpush2.msra.mxu0 0.0
        %315 = vmatprep.subr.mxu0 0.0
        %316 = vmatpush2.msra.mxu0 0.0
        %317 = vmatprep.subr.mxu0 0.0
        %318 = vmatpush2.msra.mxu0 0.0
        %319 = vmatprep.subr.mxu0 0.0
        %320 = vmatpush2.msra.mxu0 0.0
        %321 = vmatprep.subr.mxu0 0.0
        %322 = vmatpush2.msra.mxu0 0.0
        %323 = vmatprep.subr.mxu0 0.0
        %324 = vmatpush2.msra.mxu0 0.0
        %325 = vmatprep.subr.mxu0 0.0
        %326 = vmatpush2.msra.mxu0 0.0
        %327 = vmatprep.subr.mxu0 0.0
        %328 = vmatpush2.msra.mxu0 0.0
        %329 = vmatprep.subr.mxu0 0.0
        %330 = vmatpush2.msra.mxu0 0.0
        %331 = vmatprep.subr.mxu0 0.0
        %332 = vmatpush2.msra.mxu0 0.0
        %333 = vmatprep.subr.mxu0 0.0
        %334 = vmatpush2.msra.mxu0 0.0
        %335 = vmatprep.subr.mxu0 0.0
        %336 = vmatpush2.msra.mxu0 0.0
        %337 = vmatprep.subr.mxu0 0.0
        %338 = vmatpush2.msra.mxu0 0.0
        %339 = vmatprep.mubr.f32.mxu0 0.0
        %340 = vmatmul.mubr.f32.gmra.mxu0 %v259
        %v341 = vpop.f32.mrf.mxu0
        %v342 = vadd.f32 0.0, %v341
        %v343 = vpop.f32.mrf.mxu0
        %v344 = vadd.f32 0.0, %v343
        %345 = vmatprep.mubr.f32.mxu0 0.0
        %346 = vmatmul.mubr.f32.gmra.mxu0 %v262
        %v347 = vpop.f32.mrf.mxu0
        %v348 = vadd.f32 0.0, %v347
        %v349 = vpop.f32.mrf.mxu0
        %v350 = vadd.f32 0.0, %v349
        %351 = vmatprep.mubr.f32.mxu0 0.0
        %352 = vmatmul.mubr.f32.gmra.mxu0 %v265
        %v353 = vpop.f32.mrf.mxu0
        %v354 = vadd.f32 0.0, %v353
        %v355 = vpop.f32.mrf.mxu0
        %v356 = vadd.f32 0.0, %v355
        %357 = vmatprep.mubr.f32.mxu0 0.0
        %358 = vmatmul.mubr.f32.gmra.mxu0 %v268
        %v359 = vpop.f32.mrf.mxu0
        %v360 = vadd.f32 0.0, %v359
        %v361 = vpop.f32.mrf.mxu0
        %v362 = vadd.f32 0.0, %v361
        %363 = vdwg.mxu0
        %v364 = vadd.f32 %v348, %v350
        %365 = vadd.xlane.f32.xlu0 %v364
        %v366 = vpop.xlane.xlu0 %365
        %v367 = vadd.f32 %v354, %v356
        %368 = vadd.xlane.f32.xlu0 %v367
        %v369 = vpop.xlane.xlu0 %368
        %vm370 = vcmask 1041408
        %v371 = vsel %vm370, %v360, 0.0
        %v372 = vsel %vm370, %v362, 0.0
        %v373 = vadd.f32 %v371, %v372
        %374 = vadd.xlane.f32.xlu0 %v373
        %v375 = vpop.xlane.xlu0 %374
        %v376 = vmul.f32 %v366, 0.00390625
        %v377 = vmul.f32 %v369, 0.00390625
        %v378 = vmul.f32 %v375, 0.00390625
        %v379 = vld [vmem:[%s2] sm:$0xff]
        %v380 = vld [vmem:[%s2 + $0x8] sm:$0xff]
        %v381 = vld [vmem:[%s2 + $0x10] sm:$0x3]
        %v382 = vadd.f32 %v376, %v379
        %v383 = vadd.f32 %v377, %v380
        %v384 = vadd.f32 %v378, %v381
        %v385 = vtanh.pop %v382
        %v386 = vtanh.pop %v383
        %v387 = vtanh.pop %v384
        %v388 = vld [vmem:[%s5] sm:$0xff]
        %v389 = vld [vmem:[%s5 + $0x8] sm:$0xff]
        %v390 = vld [vmem:[%s5 + $0x10] sm:$0x1]
        %v391 = vld [vmem:[%s5 + $0x18] sm:$0x1]
        %v392 = vlaneseq
        %v393 = vshrl.u32 %v392, 7
        %v394 = vsub.s32 0, %v393
        %v395 = vrot.slane %v388, %v394
        %v396 = vlaneseq
        %v397 = vshrl.u32 %v396, 7
        %v398 = vsub.s32 0, %v397
        %v399 = vrot.slane %v389, %v398
        %402 = vrot.lane.b32.xlu0 %v395, 111
        %v403 = vpop.permute.xlu0 %402
        %404 = vrot.lane.b32.xlu0 %v399, 111
        %v405 = vpop.permute.xlu0 %404
        %vm406 = vcmask 908288
        %v407 = vsel %vm406, %v403, %v405
        %v411 = vmul.f32 %v344, %v403
        %v412 = vmul.f32 %v342, %v407
        %v413 = vmul.f32 %v344, %v405
        %415 = vset.pattern.permute.xlu0 0
        %416 = vperm.xlu0 %415, %v385
        %v417 = vpop.permute.xlu0 %416
        %v419 = vmul.f32 %v411, %v417
        %v420 = vmul.f32 %v412, %v417
        %v421 = vmul.f32 %v413, %v417
        %v422 = vadd.f32 %v419, 0.0
        %v423 = vadd.f32 %v420, 0.0
        %v424 = vadd.f32 %v421, 0.0
        %v425 = vlaneseq
        %v426 = vshrl.u32 %v425, 7
        %v427 = vsub.s32 1, %v426
        %v428 = vrot.slane %v388, %v427
        %v429 = vlaneseq
        %v430 = vshrl.u32 %v429, 7
        %v431 = vsub.s32 1, %v430
        %v432 = vrot.slane %v389, %v431
        %435 = vrot.lane.b32.xlu0 %v428, 112
        %v436 = vpop.permute.xlu0 %435
        %437 = vrot.lane.b32.xlu0 %v432, 112
        %v438 = vpop.permute.xlu0 %437
        %vm439 = vcmask 916480
        %v440 = vsel %vm439, %v436, %v438
        %v444 = vmul.f32 %v344, %v436
        %v445 = vmul.f32 %v342, %v440
        %v446 = vmul.f32 %v344, %v438
        %v447 = vrot.slane %v417, 2
        %v449 = vmul.f32 %v444, %v447
        %v450 = vmul.f32 %v445, %v447
        %v451 = vmul.f32 %v446, %v447
        %455 = vrot.lane.b32.xlu0 %v449, 127
        %v456 = vpop.permute.xlu0 %455
        %457 = vrot.lane.b32.xlu0 %v450, 127
        %v458 = vpop.permute.xlu0 %457
        %459 = vrot.lane.b32.xlu0 %v451, 127
        %v460 = vpop.permute.xlu0 %459
        %vm461 = vcmask 1039360
        %v462 = vsel %vm461, %v456, %v458
        %v463 = vsel %vm461, %v458, %v460
        %v467 = vadd.f32 %v422, %v462
        %v468 = vadd.f32 %v423, %v463
        %v469 = vadd.f32 %v424, %v460
        %v470 = vlaneseq
        %v471 = vshrl.u32 %v470, 7
        %v472 = vsub.s32 2, %v471
        %v473 = vrot.slane %v388, %v472
        %v474 = vlaneseq
        %v475 = vshrl.u32 %v474, 7
        %v476 = vsub.s32 2, %v475
        %v477 = vrot.slane %v389, %v476
        %480 = vrot.lane.b32.xlu0 %v473, 113
        %v481 = vpop.permute.xlu0 %480
        %482 = vrot.lane.b32.xlu0 %v477, 113
        %v483 = vpop.permute.xlu0 %482
        %vm484 = vcmask 924672
        %v485 = vsel %vm484, %v481, %v483
        %v489 = vmul.f32 %v344, %v481
        %v490 = vmul.f32 %v342, %v485
        %v491 = vmul.f32 %v344, %v483
        %v492 = vrot.slane %v417, 4
        %v494 = vmul.f32 %v489, %v492
        %v495 = vmul.f32 %v490, %v492
        %v496 = vmul.f32 %v491, %v492
        %500 = vrot.lane.b32.xlu0 %v494, 126
        %v501 = vpop.permute.xlu0 %500
        %502 = vrot.lane.b32.xlu0 %v495, 126
        %v503 = vpop.permute.xlu0 %502
        %504 = vrot.lane.b32.xlu0 %v496, 126
        %v505 = vpop.permute.xlu0 %504
        %vm506 = vcmask 1031168
        %v507 = vsel %vm506, %v501, %v503
        %v508 = vsel %vm506, %v503, %v505
        %v512 = vadd.f32 %v467, %v507
        %v513 = vadd.f32 %v468, %v508
        %v514 = vadd.f32 %v469, %v505
        %v515 = vlaneseq
        %v516 = vshrl.u32 %v515, 7
        %v517 = vsub.s32 3, %v516
        %v518 = vrot.slane %v388, %v517
        %v519 = vlaneseq
        %v520 = vshrl.u32 %v519, 7
        %v521 = vsub.s32 3, %v520
        %v522 = vrot.slane %v389, %v521
        %525 = vrot.lane.b32.xlu0 %v518, 127
        %v526 = vpop.permute.xlu0 %525
        %527 = vrot.lane.b32.xlu0 %v522, 127
        %v528 = vpop.permute.xlu0 %527
        %v529 = vsel %vm461, %v526, %v528
        %v533 = vmul.f32 %v344, %v526
        %v534 = vmul.f32 %v342, %v529
        %v535 = vmul.f32 %v344, %v528
        %v536 = vrot.slane %v417, 6
        %v538 = vmul.f32 %v533, %v536
        %v539 = vmul.f32 %v534, %v536
        %v540 = vmul.f32 %v535, %v536
        %544 = vrot.lane.b32.xlu0 %v538, 112
        %v545 = vpop.permute.xlu0 %544
        %546 = vrot.lane.b32.xlu0 %v539, 112
        %v547 = vpop.permute.xlu0 %546
        %548 = vrot.lane.b32.xlu0 %v540, 112
        %v549 = vpop.permute.xlu0 %548
        %v550 = vsel %vm439, %v545, %v547
        %v551 = vsel %vm439, %v547, %v549
        %v555 = vadd.f32 %v512, %v550
        %v556 = vadd.f32 %v513, %v551
        %v557 = vadd.f32 %v514, %v549
        %559 = vset.pattern.permute.xlu0 0
        %560 = vperm.xlu0 %559, %v386
        %v561 = vpop.permute.xlu0 %560
        %v563 = vmul.f32 %v342, %v561
        %v564 = vmul.f32 %v344, %v561
        %567 = vrot.lane.b32.xlu0 %v563, 111
        %v568 = vpop.permute.xlu0 %567
        %569 = vrot.lane.b32.xlu0 %v564, 111
        %v570 = vpop.permute.xlu0 %569
        %v571 = vsel %vm406, %v568, %v570
        %v575 = vadd.f32 %v555, %v568
        %v576 = vadd.f32 %v556, %v571
        %v577 = vadd.f32 %v557, %v570
        %v578 = vlaneseq
        %v579 = vshrl.u32 %v578, 7
        %v580 = vsub.s32 5, %v579
        %v581 = vrot.slane %v388, %v580
        %v582 = vlaneseq
        %v583 = vshrl.u32 %v582, 7
        %v584 = vsub.s32 5, %v583
        %v585 = vrot.slane %v389, %v584
        %588 = vrot.lane.b32.xlu0 %v581, 1
        %v589 = vpop.permute.xlu0 %588
        %590 = vrot.lane.b32.xlu0 %v585, 1
        %v591 = vpop.permute.xlu0 %590
        %vm592 = vcmask 7168
        %v593 = vsel %vm592, %v589, %v591
        %v597 = vmul.f32 %v342, %v589
        %v598 = vmul.f32 %v344, %v593
        %v599 = vmul.f32 %v342, %v591
        %v600 = vrot.slane %v561, 2
        %v602 = vmul.f32 %v597, %v600
        %v603 = vmul.f32 %v598, %v600
        %v604 = vmul.f32 %v599, %v600
        %608 = vrot.lane.b32.xlu0 %v602, 110
        %v609 = vpop.permute.xlu0 %608
        %610 = vrot.lane.b32.xlu0 %v603, 110
        %v611 = vpop.permute.xlu0 %610
        %612 = vrot.lane.b32.xlu0 %v604, 110
        %v613 = vpop.permute.xlu0 %612
        %vm614 = vcmask 900096
        %v615 = vsel %vm614, %v609, %v611
        %v616 = vsel %vm614, %v611, %v613
        %v620 = vadd.f32 %v575, %v609
        %v621 = vadd.f32 %v576, %v615
        %v622 = vadd.f32 %v577, %v616
        %v623 = vlaneseq
        %v624 = vshrl.u32 %v623, 7
        %v625 = vsub.s32 6, %v624
        %v626 = vrot.slane %v388, %v625
        %v627 = vlaneseq
        %v628 = vshrl.u32 %v627, 7
        %v629 = vsub.s32 6, %v628
        %v630 = vrot.slane %v389, %v629
        %633 = vrot.lane.b32.xlu0 %v626, 15
        %v634 = vpop.permute.xlu0 %633
        %635 = vrot.lane.b32.xlu0 %v630, 15
        %v636 = vpop.permute.xlu0 %635
        %vm637 = vcmask 121856
        %v638 = vsel %vm637, %v634, %v636
        %v642 = vmul.f32 %v342, %v634
        %v643 = vmul.f32 %v344, %v638
        %v644 = vmul.f32 %v342, %v636
        %v645 = vrot.slane %v561, 4
        %v647 = vmul.f32 %v642, %v645
        %v648 = vmul.f32 %v643, %v645
        %v649 = vmul.f32 %v644, %v645
        %653 = vrot.lane.b32.xlu0 %v647, 96
        %v654 = vpop.permute.xlu0 %653
        %655 = vrot.lane.b32.xlu0 %v648, 96
        %v656 = vpop.permute.xlu0 %655
        %657 = vrot.lane.b32.xlu0 %v649, 96
        %v658 = vpop.permute.xlu0 %657
        %vm659 = vcmask 785408
        %v660 = vsel %vm659, %v654, %v656
        %v661 = vsel %vm659, %v656, %v658
        %v665 = vadd.f32 %v620, %v654
        %v666 = vadd.f32 %v621, %v660
        %v667 = vadd.f32 %v622, %v661
        %v668 = vlaneseq
        %v669 = vshrl.u32 %v668, 7
        %v670 = vsub.s32 7, %v669
        %v671 = vrot.slane %v388, %v670
        %v672 = vlaneseq
        %v673 = vshrl.u32 %v672, 7
        %v674 = vsub.s32 7, %v673
        %v675 = vrot.slane %v389, %v674
        %678 = vrot.lane.b32.xlu0 %v671, 16
        %v679 = vpop.permute.xlu0 %678
        %680 = vrot.lane.b32.xlu0 %v675, 16
        %v681 = vpop.permute.xlu0 %680
        %vm682 = vcmask 130048
        %v683 = vsel %vm682, %v679, %v681
        %v687 = vmul.f32 %v342, %v679
        %v688 = vmul.f32 %v344, %v683
        %v689 = vmul.f32 %v342, %v681
        %v690 = vrot.slane %v561, 6
        %v692 = vmul.f32 %v687, %v690
        %v693 = vmul.f32 %v688, %v690
        %v694 = vmul.f32 %v689, %v690
        %698 = vrot.lane.b32.xlu0 %v692, 95
        %v699 = vpop.permute.xlu0 %698
        %700 = vrot.lane.b32.xlu0 %v693, 95
        %v701 = vpop.permute.xlu0 %700
        %702 = vrot.lane.b32.xlu0 %v694, 95
        %v703 = vpop.permute.xlu0 %702
        %vm704 = vcmask 777216
        %v705 = vsel %vm704, %v699, %v701
        %v706 = vsel %vm704, %v701, %v703
        %v710 = vadd.f32 %v665, %v699
        %v711 = vadd.f32 %v666, %v705
        %v712 = vadd.f32 %v667, %v706
        %v713 = vlaneseq
        %v714 = vshrl.u32 %v713, 7
        %v715 = vsub.s32 0, %v714
        %v716 = vrot.slane %v390, %v715
        %v717 = vlaneseq
        %v718 = vshrl.u32 %v717, 7
        %v719 = vsub.s32 0, %v718
        %v720 = vrot.slane %v391, %v719
        %723 = vrot.lane.b32.xlu0 %v716, 17
        %v724 = vpop.permute.xlu0 %723
        %725 = vrot.lane.b32.xlu0 %v720, 17
        %v726 = vpop.permute.xlu0 %725
        %vm727 = vcmask 138240
        %v728 = vsel %vm727, %v724, %v726
        %v732 = vmul.f32 %v342, %v724
        %v733 = vmul.f32 %v344, %v728
        %v734 = vmul.f32 %v342, %v726
        %736 = vset.pattern.permute.xlu0 0
        %737 = vperm.xlu0 %736, %v387
        %v738 = vpop.permute.xlu0 %737
        %v740 = vmul.f32 %v732, %v738
        %v741 = vmul.f32 %v733, %v738
        %v742 = vmul.f32 %v734, %v738
        %746 = vrot.lane.b32.xlu0 %v740, 94
        %v747 = vpop.permute.xlu0 %746
        %748 = vrot.lane.b32.xlu0 %v741, 94
        %v749 = vpop.permute.xlu0 %748
        %750 = vrot.lane.b32.xlu0 %v742, 94
        %v751 = vpop.permute.xlu0 %750
        %vm752 = vcmask 769024
        %v753 = vsel %vm752, %v747, %v749
        %v754 = vsel %vm752, %v749, %v751
        %v758 = vadd.f32 %v710, %v747
        %v759 = vadd.f32 %v711, %v753
        %v760 = vadd.f32 %v712, %v754
        %764 = vrot.lane.b32.xlu0 %v758, 17
        %v765 = vpop.permute.xlu0 %764
        %766 = vrot.lane.b32.xlu0 %v759, 17
        %v767 = vpop.permute.xlu0 %766
        %768 = vrot.lane.b32.xlu0 %v760, 17
        %v769 = vpop.permute.xlu0 %768
        %v770 = vsel %vm727, %v765, %v767
        %v771 = vsel %vm727, %v767, %v769
        %v774 = vld [vmem:[%s4] sm:$0xf]
        %776 = vset.pattern.permute.xlu0 0
        %777 = vperm.xlu0 %776, %v774
        %v778 = vpop.permute.xlu0 %777
        %v780 = vadd.f32 %v778, 0.0
        %v781 = vmul.f32 %v771, %v403
        %v782 = vmul.f32 %v770, %v407
        %v783 = vmul.f32 %v771, %v405
        %v784 = vld [vmem:[%s3] sm:$0xf]
        %788 = vrot.lane.b32.xlu0 %v781, 17
        %v789 = vpop.permute.xlu0 %788
        %790 = vrot.lane.b32.xlu0 %v782, 17
        %v791 = vpop.permute.xlu0 %790
        %792 = vrot.lane.b32.xlu0 %v783, 17
        %v793 = vpop.permute.xlu0 %792
        %v794 = vsel %vm727, %v789, %v791
        %v795 = vsel %vm727, %v791, %v793
        %vm796 = vcmask 15360
        %v798 = vsel %vm796, %v784, 0
        %v800 = vsel %vm370, %v794, 0
        %v802 = vsel %vm370, %v795, 0
        %804 = vmatprep.subr.mxu0 0.0
        %805 = vmatpush1.msra.mxu0 0.0
        %806 = vmatprep.subr.mxu0 0.0
        %807 = vmatpush1.msra.mxu0 0.0
        %808 = vmatprep.subr.mxu0 0.0
        %809 = vmatpush1.msra.mxu0 0.0
        %810 = vmatprep.subr.mxu0 0.0
        %811 = vmatpush1.msra.mxu0 0.0
        %812 = vmatprep.subr.mxu0 0.0
        %813 = vmatpush1.msra.mxu0 0.0
        %814 = vmatprep.subr.mxu0 0.0
        %815 = vmatpush1.msra.mxu0 0.0
        %816 = vmatprep.subr.mxu0 0.0
        %817 = vmatpush1.msra.mxu0 0.0
        %818 = vmatprep.subr.mxu0 0.0
        %819 = vmatpush1.msra.mxu0 0.0
        %820 = vmatprep.subr.mxu0 0.0
        %821 = vmatpush1.msra.mxu0 0.0
        %822 = vmatprep.subr.mxu0 0.0
        %823 = vmatpush1.msra.mxu0 0.0
        %824 = vmatprep.subr.mxu0 0.0
        %825 = vmatpush1.msra.mxu0 0.0
        %826 = vmatprep.subr.mxu0 0.0
        %827 = vmatpush1.msra.mxu0 0.0
        %828 = vmatprep.subr.mxu0 0.0
        %829 = vmatpush1.msra.mxu0 0.0
        %830 = vmatprep.subr.mxu0 0.0
        %831 = vmatpush1.msra.mxu0 0.0
        %832 = vmatprep.subr.mxu0 0.0
        %833 = vmatpush1.msra.mxu0 0.0
        %834 = vmatprep.subr.mxu0 %v802
        %835 = vmatpush1.msra.mxu0 %v800
        %836 = vmatprep.subr.mxu0 0.0
        %837 = vmatpush2.msra.mxu0 0.0
        %838 = vmatprep.subr.mxu0 0.0
        %839 = vmatpush2.msra.mxu0 0.0
        %840 = vmatprep.subr.mxu0 0.0
        %841 = vmatpush2.msra.mxu0 0.0
        %842 = vmatprep.subr.mxu0 0.0
        %843 = vmatpush2.msra.mxu0 0.0
        %844 = vmatprep.subr.mxu0 0.0
        %845 = vmatpush2.msra.mxu0 0.0
        %846 = vmatprep.subr.mxu0 0.0
        %847 = vmatpush2.msra.mxu0 0.0
        %848 = vmatprep.subr.mxu0 0.0
        %849 = vmatpush2.msra.mxu0 0.0
        %850 = vmatprep.subr.mxu0 0.0
        %851 = vmatpush2.msra.mxu0 0.0
        %852 = vmatprep.subr.mxu0 0.0
        %853 = vmatpush2.msra.mxu0 0.0
        %854 = vmatprep.subr.mxu0 0.0
        %855 = vmatpush2.msra.mxu0 0.0
        %856 = vmatprep.subr.mxu0 0.0
        %857 = vmatpush2.msra.mxu0 0.0
        %858 = vmatprep.subr.mxu0 0.0
        %859 = vmatpush2.msra.mxu0 0.0
        %860 = vmatprep.subr.mxu0 0.0
        %861 = vmatpush2.msra.mxu0 0.0
        %862 = vmatprep.subr.mxu0 0.0
        %863 = vmatpush2.msra.mxu0 0.0
        %864 = vmatprep.subr.mxu0 0.0
        %865 = vmatpush2.msra.mxu0 0.0
        %866 = vmatprep.subr.mxu0 0.0
        %867 = vmatpush2.msra.mxu0 0.0
        %868 = vmatprep.mubr.f32.mxu0 0.0
        %869 = vmatmul.mubr.f32.gmra.mxu0 %v798
        %v870 = vpop.f32.mrf.mxu0
        %v871 = vadd.f32 0.0, %v870
        %v872 = vpop.f32.mrf.mxu0
        %v873 = vadd.f32 0.0, %v872
        %874 = vdwg.mxu0
        %v875 = vadd.f32 %v780, %v871
        %v876 = vadd.f32 %v780, %v873
        %v877 = vmul.f32 %v771, %v436
        %v878 = vmul.f32 %v770, %v440
        %v879 = vmul.f32 %v771, %v438
        %s880 = scalar_lea.vmem %s3, 4
        %v881 = vld [vmem:[%s880] sm:$0xf]
        %885 = vrot.lane.b32.xlu0 %v877, 16
        %v886 = vpop.permute.xlu0 %885
        %887 = vrot.lane.b32.xlu0 %v878, 16
        %v888 = vpop.permute.xlu0 %887
        %889 = vrot.lane.b32.xlu0 %v879, 16
        %v890 = vpop.permute.xlu0 %889
        %v891 = vsel %vm682, %v886, %v888
        %v892 = vsel %vm682, %v888, %v890
        %v894 = vsel %vm796, %v881, 0
        %v896 = vsel %vm370, %v891, 0
        %v898 = vsel %vm370, %v892, 0
        %900 = vmatprep.subr.mxu0 0.0
        %901 = vmatpush1.msra.mxu0 0.0
        %902 = vmatprep.subr.mxu0 0.0
        %903 = vmatpush1.msra.mxu0 0.0
        %904 = vmatprep.subr.mxu0 0.0
        %905 = vmatpush1.msra.mxu0 0.0
        %906 = vmatprep.subr.mxu0 0.0
        %907 = vmatpush1.msra.mxu0 0.0
        %908 = vmatprep.subr.mxu0 0.0
        %909 = vmatpush1.msra.mxu0 0.0
        %910 = vmatprep.subr.mxu0 0.0
        %911 = vmatpush1.msra.mxu0 0.0
        %912 = vmatprep.subr.mxu0 0.0
        %913 = vmatpush1.msra.mxu0 0.0
        %914 = vmatprep.subr.mxu0 0.0
        %915 = vmatpush1.msra.mxu0 0.0
        %916 = vmatprep.subr.mxu0 0.0
        %917 = vmatpush1.msra.mxu0 0.0
        %918 = vmatprep.subr.mxu0 0.0
        %919 = vmatpush1.msra.mxu0 0.0
        %920 = vmatprep.subr.mxu0 0.0
        %921 = vmatpush1.msra.mxu0 0.0
        %922 = vmatprep.subr.mxu0 0.0
        %923 = vmatpush1.msra.mxu0 0.0
        %924 = vmatprep.subr.mxu0 0.0
        %925 = vmatpush1.msra.mxu0 0.0
        %926 = vmatprep.subr.mxu0 0.0
        %927 = vmatpush1.msra.mxu0 0.0
        %928 = vmatprep.subr.mxu0 0.0
        %929 = vmatpush1.msra.mxu0 0.0
        %930 = vmatprep.subr.mxu0 %v898
        %931 = vmatpush1.msra.mxu0 %v896
        %932 = vmatprep.subr.mxu0 0.0
        %933 = vmatpush2.msra.mxu0 0.0
        %934 = vmatprep.subr.mxu0 0.0
        %935 = vmatpush2.msra.mxu0 0.0
        %936 = vmatprep.subr.mxu0 0.0
        %937 = vmatpush2.msra.mxu0 0.0
        %938 = vmatprep.subr.mxu0 0.0
        %939 = vmatpush2.msra.mxu0 0.0
        %940 = vmatprep.subr.mxu0 0.0
        %941 = vmatpush2.msra.mxu0 0.0
        %942 = vmatprep.subr.mxu0 0.0
        %943 = vmatpush2.msra.mxu0 0.0
        %944 = vmatprep.subr.mxu0 0.0
        %945 = vmatpush2.msra.mxu0 0.0
        %946 = vmatprep.subr.mxu0 0.0
        %947 = vmatpush2.msra.mxu0 0.0
        %948 = vmatprep.subr.mxu0 0.0
        %949 = vmatpush2.msra.mxu0 0.0
        %950 = vmatprep.subr.mxu0 0.0
        %951 = vmatpush2.msra.mxu0 0.0
        %952 = vmatprep.subr.mxu0 0.0
        %953 = vmatpush2.msra.mxu0 0.0
        %954 = vmatprep.subr.mxu0 0.0
        %955 = vmatpush2.msra.mxu0 0.0
        %956 = vmatprep.subr.mxu0 0.0
        %957 = vmatpush2.msra.mxu0 0.0
        %958 = vmatprep.subr.mxu0 0.0
        %959 = vmatpush2.msra.mxu0 0.0
        %960 = vmatprep.subr.mxu0 0.0
        %961 = vmatpush2.msra.mxu0 0.0
        %962 = vmatprep.subr.mxu0 0.0
        %963 = vmatpush2.msra.mxu0 0.0
        %964 = vmatprep.mubr.f32.mxu0 0.0
        %965 = vmatmul.mubr.f32.gmra.mxu0 %v894
        %v966 = vpop.f32.mrf.mxu0
        %v967 = vadd.f32 0.0, %v966
        %v968 = vpop.f32.mrf.mxu0
        %v969 = vadd.f32 0.0, %v968
        %970 = vdwg.mxu0
        %v971 = vadd.f32 %v875, %v967
        %v972 = vadd.f32 %v876, %v969
        %v973 = vmul.f32 %v771, %v481
        %v974 = vmul.f32 %v770, %v485
        %v975 = vmul.f32 %v771, %v483
        %s976 = scalar_lea.vmem %s3, 8
        %v977 = vld [vmem:[%s976] sm:$0xf]
        %981 = vrot.lane.b32.xlu0 %v973, 15
        %v982 = vpop.permute.xlu0 %981
        %983 = vrot.lane.b32.xlu0 %v974, 15
        %v984 = vpop.permute.xlu0 %983
        %985 = vrot.lane.b32.xlu0 %v975, 15
        %v986 = vpop.permute.xlu0 %985
        %v987 = vsel %vm637, %v982, %v984
        %v988 = vsel %vm637, %v984, %v986
        %v990 = vsel %vm796, %v977, 0
        %v992 = vsel %vm370, %v987, 0
        %v994 = vsel %vm370, %v988, 0
        %996 = vmatprep.subr.mxu0 0.0
        %997 = vmatpush1.msra.mxu0 0.0
        %998 = vmatprep.subr.mxu0 0.0
        %999 = vmatpush1.msra.mxu0 0.0
        %1000 = vmatprep.subr.mxu0 0.0
        %1001 = vmatpush1.msra.mxu0 0.0
        %1002 = vmatprep.subr.mxu0 0.0
        %1003 = vmatpush1.msra.mxu0 0.0
        %1004 = vmatprep.subr.mxu0 0.0
        %1005 = vmatpush1.msra.mxu0 0.0
        %1006 = vmatprep.subr.mxu0 0.0
        %1007 = vmatpush1.msra.mxu0 0.0
        %1008 = vmatprep.subr.mxu0 0.0
        %1009 = vmatpush1.msra.mxu0 0.0
        %1010 = vmatprep.subr.mxu0 0.0
        %1011 = vmatpush1.msra.mxu0 0.0
        %1012 = vmatprep.subr.mxu0 0.0
        %1013 = vmatpush1.msra.mxu0 0.0
        %1014 = vmatprep.subr.mxu0 0.0
        %1015 = vmatpush1.msra.mxu0 0.0
        %1016 = vmatprep.subr.mxu0 0.0
        %1017 = vmatpush1.msra.mxu0 0.0
        %1018 = vmatprep.subr.mxu0 0.0
        %1019 = vmatpush1.msra.mxu0 0.0
        %1020 = vmatprep.subr.mxu0 0.0
        %1021 = vmatpush1.msra.mxu0 0.0
        %1022 = vmatprep.subr.mxu0 0.0
        %1023 = vmatpush1.msra.mxu0 0.0
        %1024 = vmatprep.subr.mxu0 0.0
        %1025 = vmatpush1.msra.mxu0 0.0
        %1026 = vmatprep.subr.mxu0 %v994
        %1027 = vmatpush1.msra.mxu0 %v992
        %1028 = vmatprep.subr.mxu0 0.0
        %1029 = vmatpush2.msra.mxu0 0.0
        %1030 = vmatprep.subr.mxu0 0.0
        %1031 = vmatpush2.msra.mxu0 0.0
        %1032 = vmatprep.subr.mxu0 0.0
        %1033 = vmatpush2.msra.mxu0 0.0
        %1034 = vmatprep.subr.mxu0 0.0
        %1035 = vmatpush2.msra.mxu0 0.0
        %1036 = vmatprep.subr.mxu0 0.0
        %1037 = vmatpush2.msra.mxu0 0.0
        %1038 = vmatprep.subr.mxu0 0.0
        %1039 = vmatpush2.msra.mxu0 0.0
        %1040 = vmatprep.subr.mxu0 0.0
        %1041 = vmatpush2.msra.mxu0 0.0
        %1042 = vmatprep.subr.mxu0 0.0
        %1043 = vmatpush2.msra.mxu0 0.0
        %1044 = vmatprep.subr.mxu0 0.0
        %1045 = vmatpush2.msra.mxu0 0.0
        %1046 = vmatprep.subr.mxu0 0.0
        %1047 = vmatpush2.msra.mxu0 0.0
        %1048 = vmatprep.subr.mxu0 0.0
        %1049 = vmatpush2.msra.mxu0 0.0
        %1050 = vmatprep.subr.mxu0 0.0
        %1051 = vmatpush2.msra.mxu0 0.0
        %1052 = vmatprep.subr.mxu0 0.0
        %1053 = vmatpush2.msra.mxu0 0.0
        %1054 = vmatprep.subr.mxu0 0.0
        %1055 = vmatpush2.msra.mxu0 0.0
        %1056 = vmatprep.subr.mxu0 0.0
        %1057 = vmatpush2.msra.mxu0 0.0
        %1058 = vmatprep.subr.mxu0 0.0
        %1059 = vmatpush2.msra.mxu0 0.0
        %1060 = vmatprep.mubr.f32.mxu0 0.0
        %1061 = vmatmul.mubr.f32.gmra.mxu0 %v990
        %v1062 = vpop.f32.mrf.mxu0
        %v1063 = vadd.f32 0.0, %v1062
        %v1064 = vpop.f32.mrf.mxu0
        %v1065 = vadd.f32 0.0, %v1064
        %1066 = vdwg.mxu0
        %v1067 = vadd.f32 %v971, %v1063
        %v1068 = vadd.f32 %v972, %v1065
        %v1069 = vmul.f32 %v771, %v526
        %v1070 = vmul.f32 %v770, %v529
        %v1071 = vmul.f32 %v771, %v528
        %s1072 = scalar_lea.vmem %s3, 12
        %v1073 = vld [vmem:[%s1072] sm:$0xf]
        %1077 = vrot.lane.b32.xlu0 %v1069, 1
        %v1078 = vpop.permute.xlu0 %1077
        %1079 = vrot.lane.b32.xlu0 %v1070, 1
        %v1080 = vpop.permute.xlu0 %1079
        %1081 = vrot.lane.b32.xlu0 %v1071, 1
        %v1082 = vpop.permute.xlu0 %1081
        %v1083 = vsel %vm592, %v1078, %v1080
        %v1084 = vsel %vm592, %v1080, %v1082
        %v1086 = vsel %vm796, %v1073, 0
        %v1088 = vsel %vm370, %v1083, 0
        %v1090 = vsel %vm370, %v1084, 0
        %1092 = vmatprep.subr.mxu0 0.0
        %1093 = vmatpush1.msra.mxu0 0.0
        %1094 = vmatprep.subr.mxu0 0.0
        %1095 = vmatpush1.msra.mxu0 0.0
        %1096 = vmatprep.subr.mxu0 0.0
        %1097 = vmatpush1.msra.mxu0 0.0
        %1098 = vmatprep.subr.mxu0 0.0
        %1099 = vmatpush1.msra.mxu0 0.0
        %1100 = vmatprep.subr.mxu0 0.0
        %1101 = vmatpush1.msra.mxu0 0.0
        %1102 = vmatprep.subr.mxu0 0.0
        %1103 = vmatpush1.msra.mxu0 0.0
        %1104 = vmatprep.subr.mxu0 0.0
        %1105 = vmatpush1.msra.mxu0 0.0
        %1106 = vmatprep.subr.mxu0 0.0
        %1107 = vmatpush1.msra.mxu0 0.0
        %1108 = vmatprep.subr.mxu0 0.0
        %1109 = vmatpush1.msra.mxu0 0.0
        %1110 = vmatprep.subr.mxu0 0.0
        %1111 = vmatpush1.msra.mxu0 0.0
        %1112 = vmatprep.subr.mxu0 0.0
        %1113 = vmatpush1.msra.mxu0 0.0
        %1114 = vmatprep.subr.mxu0 0.0
        %1115 = vmatpush1.msra.mxu0 0.0
        %1116 = vmatprep.subr.mxu0 0.0
        %1117 = vmatpush1.msra.mxu0 0.0
        %1118 = vmatprep.subr.mxu0 0.0
        %1119 = vmatpush1.msra.mxu0 0.0
        %1120 = vmatprep.subr.mxu0 0.0
        %1121 = vmatpush1.msra.mxu0 0.0
        %1122 = vmatprep.subr.mxu0 %v1090
        %1123 = vmatpush1.msra.mxu0 %v1088
        %1124 = vmatprep.subr.mxu0 0.0
        %1125 = vmatpush2.msra.mxu0 0.0
        %1126 = vmatprep.subr.mxu0 0.0
        %1127 = vmatpush2.msra.mxu0 0.0
        %1128 = vmatprep.subr.mxu0 0.0
        %1129 = vmatpush2.msra.mxu0 0.0
        %1130 = vmatprep.subr.mxu0 0.0
        %1131 = vmatpush2.msra.mxu0 0.0
        %1132 = vmatprep.subr.mxu0 0.0
        %1133 = vmatpush2.msra.mxu0 0.0
        %1134 = vmatprep.subr.mxu0 0.0
        %1135 = vmatpush2.msra.mxu0 0.0
        %1136 = vmatprep.subr.mxu0 0.0
        %1137 = vmatpush2.msra.mxu0 0.0
        %1138 = vmatprep.subr.mxu0 0.0
        %1139 = vmatpush2.msra.mxu0 0.0
        %1140 = vmatprep.subr.mxu0 0.0
        %1141 = vmatpush2.msra.mxu0 0.0
        %1142 = vmatprep.subr.mxu0 0.0
        %1143 = vmatpush2.msra.mxu0 0.0
        %1144 = vmatprep.subr.mxu0 0.0
        %1145 = vmatpush2.msra.mxu0 0.0
        %1146 = vmatprep.subr.mxu0 0.0
        %1147 = vmatpush2.msra.mxu0 0.0
        %1148 = vmatprep.subr.mxu0 0.0
        %1149 = vmatpush2.msra.mxu0 0.0
        %1150 = vmatprep.subr.mxu0 0.0
        %1151 = vmatpush2.msra.mxu0 0.0
        %1152 = vmatprep.subr.mxu0 0.0
        %1153 = vmatpush2.msra.mxu0 0.0
        %1154 = vmatprep.subr.mxu0 0.0
        %1155 = vmatpush2.msra.mxu0 0.0
        %1156 = vmatprep.mubr.f32.mxu0 0.0
        %1157 = vmatmul.mubr.f32.gmra.mxu0 %v1086
        %v1158 = vpop.f32.mrf.mxu0
        %v1159 = vadd.f32 0.0, %v1158
        %v1160 = vpop.f32.mrf.mxu0
        %v1161 = vadd.f32 0.0, %v1160
        %1162 = vdwg.mxu0
        %v1163 = vadd.f32 %v1067, %v1159
        %v1164 = vadd.f32 %v1068, %v1161
        %s1165 = scalar_lea.vmem %s3, 16
        %v1166 = vld [vmem:[%s1165] sm:$0xf]
        %v1168 = vsel %vm796, %v1166, 0
        %v1170 = vsel %vm370, %v770, 0
        %v1172 = vsel %vm370, %v771, 0
        %1174 = vmatprep.subr.mxu0 0.0
        %1175 = vmatpush1.msra.mxu0 0.0
        %1176 = vmatprep.subr.mxu0 0.0
        %1177 = vmatpush1.msra.mxu0 0.0
        %1178 = vmatprep.subr.mxu0 0.0
        %1179 = vmatpush1.msra.mxu0 0.0
        %1180 = vmatprep.subr.mxu0 0.0
        %1181 = vmatpush1.msra.mxu0 0.0
        %1182 = vmatprep.subr.mxu0 0.0
        %1183 = vmatpush1.msra.mxu0 0.0
        %1184 = vmatprep.subr.mxu0 0.0
        %1185 = vmatpush1.msra.mxu0 0.0
        %1186 = vmatprep.subr.mxu0 0.0
        %1187 = vmatpush1.msra.mxu0 0.0
        %1188 = vmatprep.subr.mxu0 0.0
        %1189 = vmatpush1.msra.mxu0 0.0
        %1190 = vmatprep.subr.mxu0 0.0
        %1191 = vmatpush1.msra.mxu0 0.0
        %1192 = vmatprep.subr.mxu0 0.0
        %1193 = vmatpush1.msra.mxu0 0.0
        %1194 = vmatprep.subr.mxu0 0.0
        %1195 = vmatpush1.msra.mxu0 0.0
        %1196 = vmatprep.subr.mxu0 0.0
        %1197 = vmatpush1.msra.mxu0 0.0
        %1198 = vmatprep.subr.mxu0 0.0
        %1199 = vmatpush1.msra.mxu0 0.0
        %1200 = vmatprep.subr.mxu0 0.0
        %1201 = vmatpush1.msra.mxu0 0.0
        %1202 = vmatprep.subr.mxu0 0.0
        %1203 = vmatpush1.msra.mxu0 0.0
        %1204 = vmatprep.subr.mxu0 %v1172
        %1205 = vmatpush1.msra.mxu0 %v1170
        %1206 = vmatprep.subr.mxu0 0.0
        %1207 = vmatpush2.msra.mxu0 0.0
        %1208 = vmatprep.subr.mxu0 0.0
        %1209 = vmatpush2.msra.mxu0 0.0
        %1210 = vmatprep.subr.mxu0 0.0
        %1211 = vmatpush2.msra.mxu0 0.0
        %1212 = vmatprep.subr.mxu0 0.0
        %1213 = vmatpush2.msra.mxu0 0.0
        %1214 = vmatprep.subr.mxu0 0.0
        %1215 = vmatpush2.msra.mxu0 0.0
        %1216 = vmatprep.subr.mxu0 0.0
        %1217 = vmatpush2.msra.mxu0 0.0
        %1218 = vmatprep.subr.mxu0 0.0
        %1219 = vmatpush2.msra.mxu0 0.0
        %1220 = vmatprep.subr.mxu0 0.0
        %1221 = vmatpush2.msra.mxu0 0.0
        %1222 = vmatprep.subr.mxu0 0.0
        %1223 = vmatpush2.msra.mxu0 0.0
        %1224 = vmatprep.subr.mxu0 0.0
        %1225 = vmatpush2.msra.mxu0 0.0
        %1226 = vmatprep.subr.mxu0 0.0
        %1227 = vmatpush2.msra.mxu0 0.0
        %1228 = vmatprep.subr.mxu0 0.0
        %1229 = vmatpush2.msra.mxu0 0.0
        %1230 = vmatprep.subr.mxu0 0.0
        %1231 = vmatpush2.msra.mxu0 0.0
        %1232 = vmatprep.subr.mxu0 0.0
        %1233 = vmatpush2.msra.mxu0 0.0
        %1234 = vmatprep.subr.mxu0 0.0
        %1235 = vmatpush2.msra.mxu0 0.0
        %1236 = vmatprep.subr.mxu0 0.0
        %1237 = vmatpush2.msra.mxu0 0.0
        %1238 = vmatprep.mubr.f32.mxu0 0.0
        %1239 = vmatmul.mubr.f32.gmra.mxu0 %v1168
        %v1240 = vpop.f32.mrf.mxu0
        %v1241 = vadd.f32 0.0, %v1240
        %v1242 = vpop.f32.mrf.mxu0
        %v1243 = vadd.f32 0.0, %v1242
        %1244 = vdwg.mxu0
        %v1245 = vadd.f32 %v1163, %v1241
        %v1246 = vadd.f32 %v1164, %v1243
        %v1247 = vmul.f32 %v770, %v589
        %v1248 = vmul.f32 %v771, %v593
        %v1249 = vmul.f32 %v770, %v591
        %s1250 = scalar_lea.vmem %s3, 20
        %v1251 = vld [vmem:[%s1250] sm:$0xf]
        %1255 = vrot.lane.b32.xlu0 %v1247, 127
        %v1256 = vpop.permute.xlu0 %1255
        %1257 = vrot.lane.b32.xlu0 %v1248, 127
        %v1258 = vpop.permute.xlu0 %1257
        %1259 = vrot.lane.b32.xlu0 %v1249, 127
        %v1260 = vpop.permute.xlu0 %1259
        %v1261 = vsel %vm461, %v1256, %v1258
        %v1262 = vsel %vm461, %v1258, %v1260
        %v1264 = vsel %vm796, %v1251, 0
        %v1266 = vsel %vm370, %v1261, 0
        %v1268 = vsel %vm370, %v1262, 0
        %1270 = vmatprep.subr.mxu0 0.0
        %1271 = vmatpush1.msra.mxu0 0.0
        %1272 = vmatprep.subr.mxu0 0.0
        %1273 = vmatpush1.msra.mxu0 0.0
        %1274 = vmatprep.subr.mxu0 0.0
        %1275 = vmatpush1.msra.mxu0 0.0
        %1276 = vmatprep.subr.mxu0 0.0
        %1277 = vmatpush1.msra.mxu0 0.0
        %1278 = vmatprep.subr.mxu0 0.0
        %1279 = vmatpush1.msra.mxu0 0.0
        %1280 = vmatprep.subr.mxu0 0.0
        %1281 = vmatpush1.msra.mxu0 0.0
        %1282 = vmatprep.subr.mxu0 0.0
        %1283 = vmatpush1.msra.mxu0 0.0
        %1284 = vmatprep.subr.mxu0 0.0
        %1285 = vmatpush1.msra.mxu0 0.0
        %1286 = vmatprep.subr.mxu0 0.0
        %1287 = vmatpush1.msra.mxu0 0.0
        %1288 = vmatprep.subr.mxu0 0.0
        %1289 = vmatpush1.msra.mxu0 0.0
        %1290 = vmatprep.subr.mxu0 0.0
        %1291 = vmatpush1.msra.mxu0 0.0
        %1292 = vmatprep.subr.mxu0 0.0
        %1293 = vmatpush1.msra.mxu0 0.0
        %1294 = vmatprep.subr.mxu0 0.0
        %1295 = vmatpush1.msra.mxu0 0.0
        %1296 = vmatprep.subr.mxu0 0.0
        %1297 = vmatpush1.msra.mxu0 0.0
        %1298 = vmatprep.subr.mxu0 0.0
        %1299 = vmatpush1.msra.mxu0 0.0
        %1300 = vmatprep.subr.mxu0 %v1268
        %1301 = vmatpush1.msra.mxu0 %v1266
        %1302 = vmatprep.subr.mxu0 0.0
        %1303 = vmatpush2.msra.mxu0 0.0
        %1304 = vmatprep.subr.mxu0 0.0
        %1305 = vmatpush2.msra.mxu0 0.0
        %1306 = vmatprep.subr.mxu0 0.0
        %1307 = vmatpush2.msra.mxu0 0.0
        %1308 = vmatprep.subr.mxu0 0.0
        %1309 = vmatpush2.msra.mxu0 0.0
        %1310 = vmatprep.subr.mxu0 0.0
        %1311 = vmatpush2.msra.mxu0 0.0
        %1312 = vmatprep.subr.mxu0 0.0
        %1313 = vmatpush2.msra.mxu0 0.0
        %1314 = vmatprep.subr.mxu0 0.0
        %1315 = vmatpush2.msra.mxu0 0.0
        %1316 = vmatprep.subr.mxu0 0.0
        %1317 = vmatpush2.msra.mxu0 0.0
        %1318 = vmatprep.subr.mxu0 0.0
        %1319 = vmatpush2.msra.mxu0 0.0
        %1320 = vmatprep.subr.mxu0 0.0
        %1321 = vmatpush2.msra.mxu0 0.0
        %1322 = vmatprep.subr.mxu0 0.0
        %1323 = vmatpush2.msra.mxu0 0.0
        %1324 = vmatprep.subr.mxu0 0.0
        %1325 = vmatpush2.msra.mxu0 0.0
        %1326 = vmatprep.subr.mxu0 0.0
        %1327 = vmatpush2.msra.mxu0 0.0
        %1328 = vmatprep.subr.mxu0 0.0
        %1329 = vmatpush2.msra.mxu0 0.0
        %1330 = vmatprep.subr.mxu0 0.0
        %1331 = vmatpush2.msra.mxu0 0.0
        %1332 = vmatprep.subr.mxu0 0.0
        %1333 = vmatpush2.msra.mxu0 0.0
        %1334 = vmatprep.mubr.f32.mxu0 0.0
        %1335 = vmatmul.mubr.f32.gmra.mxu0 %v1264
        %v1336 = vpop.f32.mrf.mxu0
        %v1337 = vadd.f32 0.0, %v1336
        %v1338 = vpop.f32.mrf.mxu0
        %v1339 = vadd.f32 0.0, %v1338
        %1340 = vdwg.mxu0
        %v1341 = vadd.f32 %v1245, %v1337
        %v1342 = vadd.f32 %v1246, %v1339
        %v1343 = vmul.f32 %v770, %v634
        %v1344 = vmul.f32 %v771, %v638
        %v1345 = vmul.f32 %v770, %v636
        %s1346 = scalar_lea.vmem %s3, 24
        %v1347 = vld [vmem:[%s1346] sm:$0xf]
        %1351 = vrot.lane.b32.xlu0 %v1343, 113
        %v1352 = vpop.permute.xlu0 %1351
        %1353 = vrot.lane.b32.xlu0 %v1344, 113
        %v1354 = vpop.permute.xlu0 %1353
        %1355 = vrot.lane.b32.xlu0 %v1345, 113
        %v1356 = vpop.permute.xlu0 %1355
        %v1357 = vsel %vm484, %v1352, %v1354
        %v1358 = vsel %vm484, %v1354, %v1356
        %v1360 = vsel %vm796, %v1347, 0
        %v1362 = vsel %vm370, %v1357, 0
        %v1364 = vsel %vm370, %v1358, 0
        %1366 = vmatprep.subr.mxu0 0.0
        %1367 = vmatpush1.msra.mxu0 0.0
        %1368 = vmatprep.subr.mxu0 0.0
        %1369 = vmatpush1.msra.mxu0 0.0
        %1370 = vmatprep.subr.mxu0 0.0
        %1371 = vmatpush1.msra.mxu0 0.0
        %1372 = vmatprep.subr.mxu0 0.0
        %1373 = vmatpush1.msra.mxu0 0.0
        %1374 = vmatprep.subr.mxu0 0.0
        %1375 = vmatpush1.msra.mxu0 0.0
        %1376 = vmatprep.subr.mxu0 0.0
        %1377 = vmatpush1.msra.mxu0 0.0
        %1378 = vmatprep.subr.mxu0 0.0
        %1379 = vmatpush1.msra.mxu0 0.0
        %1380 = vmatprep.subr.mxu0 0.0
        %1381 = vmatpush1.msra.mxu0 0.0
        %1382 = vmatprep.subr.mxu0 0.0
        %1383 = vmatpush1.msra.mxu0 0.0
        %1384 = vmatprep.subr.mxu0 0.0
        %1385 = vmatpush1.msra.mxu0 0.0
        %1386 = vmatprep.subr.mxu0 0.0
        %1387 = vmatpush1.msra.mxu0 0.0
        %1388 = vmatprep.subr.mxu0 0.0
        %1389 = vmatpush1.msra.mxu0 0.0
        %1390 = vmatprep.subr.mxu0 0.0
        %1391 = vmatpush1.msra.mxu0 0.0
        %1392 = vmatprep.subr.mxu0 0.0
        %1393 = vmatpush1.msra.mxu0 0.0
        %1394 = vmatprep.subr.mxu0 0.0
        %1395 = vmatpush1.msra.mxu0 0.0
        %1396 = vmatprep.subr.mxu0 %v1364
        %1397 = vmatpush1.msra.mxu0 %v1362
        %1398 = vmatprep.subr.mxu0 0.0
        %1399 = vmatpush2.msra.mxu0 0.0
        %1400 = vmatprep.subr.mxu0 0.0
        %1401 = vmatpush2.msra.mxu0 0.0
        %1402 = vmatprep.subr.mxu0 0.0
        %1403 = vmatpush2.msra.mxu0 0.0
        %1404 = vmatprep.subr.mxu0 0.0
        %1405 = vmatpush2.msra.mxu0 0.0
        %1406 = vmatprep.subr.mxu0 0.0
        %1407 = vmatpush2.msra.mxu0 0.0
        %1408 = vmatprep.subr.mxu0 0.0
        %1409 = vmatpush2.msra.mxu0 0.0
        %1410 = vmatprep.subr.mxu0 0.0
        %1411 = vmatpush2.msra.mxu0 0.0
        %1412 = vmatprep.subr.mxu0 0.0
        %1413 = vmatpush2.msra.mxu0 0.0
        %1414 = vmatprep.subr.mxu0 0.0
        %1415 = vmatpush2.msra.mxu0 0.0
        %1416 = vmatprep.subr.mxu0 0.0
        %1417 = vmatpush2.msra.mxu0 0.0
        %1418 = vmatprep.subr.mxu0 0.0
        %1419 = vmatpush2.msra.mxu0 0.0
        %1420 = vmatprep.subr.mxu0 0.0
        %1421 = vmatpush2.msra.mxu0 0.0
        %1422 = vmatprep.subr.mxu0 0.0
        %1423 = vmatpush2.msra.mxu0 0.0
        %1424 = vmatprep.subr.mxu0 0.0
        %1425 = vmatpush2.msra.mxu0 0.0
        %1426 = vmatprep.subr.mxu0 0.0
        %1427 = vmatpush2.msra.mxu0 0.0
        %1428 = vmatprep.subr.mxu0 0.0
        %1429 = vmatpush2.msra.mxu0 0.0
        %1430 = vmatprep.mubr.f32.mxu0 0.0
        %1431 = vmatmul.mubr.f32.gmra.mxu0 %v1360
        %v1432 = vpop.f32.mrf.mxu0
        %v1433 = vadd.f32 0.0, %v1432
        %v1434 = vpop.f32.mrf.mxu0
        %v1435 = vadd.f32 0.0, %v1434
        %1436 = vdwg.mxu0
        %v1437 = vadd.f32 %v1341, %v1433
        %v1438 = vadd.f32 %v1342, %v1435
        %v1439 = vmul.f32 %v770, %v679
        %v1440 = vmul.f32 %v771, %v683
        %v1441 = vmul.f32 %v770, %v681
        %s1442 = scalar_lea.vmem %s3, 28
        %v1443 = vld [vmem:[%s1442] sm:$0xf]
        %1447 = vrot.lane.b32.xlu0 %v1439, 112
        %v1448 = vpop.permute.xlu0 %1447
        %1449 = vrot.lane.b32.xlu0 %v1440, 112
        %v1450 = vpop.permute.xlu0 %1449
        %1451 = vrot.lane.b32.xlu0 %v1441, 112
        %v1452 = vpop.permute.xlu0 %1451
        %v1453 = vsel %vm439, %v1448, %v1450
        %v1454 = vsel %vm439, %v1450, %v1452
        %v1456 = vsel %vm796, %v1443, 0
        %v1458 = vsel %vm370, %v1453, 0
        %v1460 = vsel %vm370, %v1454, 0
        %1462 = vmatprep.subr.mxu0 0.0
        %1463 = vmatpush1.msra.mxu0 0.0
        %1464 = vmatprep.subr.mxu0 0.0
        %1465 = vmatpush1.msra.mxu0 0.0
        %1466 = vmatprep.subr.mxu0 0.0
        %1467 = vmatpush1.msra.mxu0 0.0
        %1468 = vmatprep.subr.mxu0 0.0
        %1469 = vmatpush1.msra.mxu0 0.0
        %1470 = vmatprep.subr.mxu0 0.0
        %1471 = vmatpush1.msra.mxu0 0.0
        %1472 = vmatprep.subr.mxu0 0.0
        %1473 = vmatpush1.msra.mxu0 0.0
        %1474 = vmatprep.subr.mxu0 0.0
        %1475 = vmatpush1.msra.mxu0 0.0
        %1476 = vmatprep.subr.mxu0 0.0
        %1477 = vmatpush1.msra.mxu0 0.0
        %1478 = vmatprep.subr.mxu0 0.0
        %1479 = vmatpush1.msra.mxu0 0.0
        %1480 = vmatprep.subr.mxu0 0.0
        %1481 = vmatpush1.msra.mxu0 0.0
        %1482 = vmatprep.subr.mxu0 0.0
        %1483 = vmatpush1.msra.mxu0 0.0
        %1484 = vmatprep.subr.mxu0 0.0
        %1485 = vmatpush1.msra.mxu0 0.0
        %1486 = vmatprep.subr.mxu0 0.0
        %1487 = vmatpush1.msra.mxu0 0.0
        %1488 = vmatprep.subr.mxu0 0.0
        %1489 = vmatpush1.msra.mxu0 0.0
        %1490 = vmatprep.subr.mxu0 0.0
        %1491 = vmatpush1.msra.mxu0 0.0
        %1492 = vmatprep.subr.mxu0 %v1460
        %1493 = vmatpush1.msra.mxu0 %v1458
        %1494 = vmatprep.subr.mxu0 0.0
        %1495 = vmatpush2.msra.mxu0 0.0
        %1496 = vmatprep.subr.mxu0 0.0
        %1497 = vmatpush2.msra.mxu0 0.0
        %1498 = vmatprep.subr.mxu0 0.0
        %1499 = vmatpush2.msra.mxu0 0.0
        %1500 = vmatprep.subr.mxu0 0.0
        %1501 = vmatpush2.msra.mxu0 0.0
        %1502 = vmatprep.subr.mxu0 0.0
        %1503 = vmatpush2.msra.mxu0 0.0
        %1504 = vmatprep.subr.mxu0 0.0
        %1505 = vmatpush2.msra.mxu0 0.0
        %1506 = vmatprep.subr.mxu0 0.0
        %1507 = vmatpush2.msra.mxu0 0.0
        %1508 = vmatprep.subr.mxu0 0.0
        %1509 = vmatpush2.msra.mxu0 0.0
        %1510 = vmatprep.subr.mxu0 0.0
        %1511 = vmatpush2.msra.mxu0 0.0
        %1512 = vmatprep.subr.mxu0 0.0
        %1513 = vmatpush2.msra.mxu0 0.0
        %1514 = vmatprep.subr.mxu0 0.0
        %1515 = vmatpush2.msra.mxu0 0.0
        %1516 = vmatprep.subr.mxu0 0.0
        %1517 = vmatpush2.msra.mxu0 0.0
        %1518 = vmatprep.subr.mxu0 0.0
        %1519 = vmatpush2.msra.mxu0 0.0
        %1520 = vmatprep.subr.mxu0 0.0
        %1521 = vmatpush2.msra.mxu0 0.0
        %1522 = vmatprep.subr.mxu0 0.0
        %1523 = vmatpush2.msra.mxu0 0.0
        %1524 = vmatprep.subr.mxu0 0.0
        %1525 = vmatpush2.msra.mxu0 0.0
        %1526 = vmatprep.mubr.f32.mxu0 0.0
        %1527 = vmatmul.mubr.f32.gmra.mxu0 %v1456
        %v1528 = vpop.f32.mrf.mxu0
        %v1529 = vadd.f32 0.0, %v1528
        %v1530 = vpop.f32.mrf.mxu0
        %v1531 = vadd.f32 0.0, %v1530
        %1532 = vdwg.mxu0
        %v1533 = vadd.f32 %v1437, %v1529
        %v1534 = vadd.f32 %v1438, %v1531
        %v1535 = vmul.f32 %v770, %v724
        %v1536 = vmul.f32 %v771, %v728
        %v1537 = vmul.f32 %v770, %v726
        %s1538 = scalar_lea.vmem %s3, 32
        %v1539 = vld [vmem:[%s1538] sm:$0xf]
        %1543 = vrot.lane.b32.xlu0 %v1535, 111
        %v1544 = vpop.permute.xlu0 %1543
        %1545 = vrot.lane.b32.xlu0 %v1536, 111
        %v1546 = vpop.permute.xlu0 %1545
        %1547 = vrot.lane.b32.xlu0 %v1537, 111
        %v1548 = vpop.permute.xlu0 %1547
        %v1549 = vsel %vm406, %v1544, %v1546
        %v1550 = vsel %vm406, %v1546, %v1548
        %v1552 = vsel %vm796, %v1539, 0
        %v1554 = vsel %vm370, %v1549, 0
        %v1556 = vsel %vm370, %v1550, 0
        %1558 = vmatprep.subr.mxu0 0.0
        %1559 = vmatpush1.msra.mxu0 0.0
        %1560 = vmatprep.subr.mxu0 0.0
        %1561 = vmatpush1.msra.mxu0 0.0
        %1562 = vmatprep.subr.mxu0 0.0
        %1563 = vmatpush1.msra.mxu0 0.0
        %1564 = vmatprep.subr.mxu0 0.0
        %1565 = vmatpush1.msra.mxu0 0.0
        %1566 = vmatprep.subr.mxu0 0.0
        %1567 = vmatpush1.msra.mxu0 0.0
        %1568 = vmatprep.subr.mxu0 0.0
        %1569 = vmatpush1.msra.mxu0 0.0
        %1570 = vmatprep.subr.mxu0 0.0
        %1571 = vmatpush1.msra.mxu0 0.0
        %1572 = vmatprep.subr.mxu0 0.0
        %1573 = vmatpush1.msra.mxu0 0.0
        %1574 = vmatprep.subr.mxu0 0.0
        %1575 = vmatpush1.msra.mxu0 0.0
        %1576 = vmatprep.subr.mxu0 0.0
        %1577 = vmatpush1.msra.mxu0 0.0
        %1578 = vmatprep.subr.mxu0 0.0
        %1579 = vmatpush1.msra.mxu0 0.0
        %1580 = vmatprep.subr.mxu0 0.0
        %1581 = vmatpush1.msra.mxu0 0.0
        %1582 = vmatprep.subr.mxu0 0.0
        %1583 = vmatpush1.msra.mxu0 0.0
        %1584 = vmatprep.subr.mxu0 0.0
        %1585 = vmatpush1.msra.mxu0 0.0
        %1586 = vmatprep.subr.mxu0 0.0
        %1587 = vmatpush1.msra.mxu0 0.0
        %1588 = vmatprep.subr.mxu0 %v1556
        %1589 = vmatpush1.msra.mxu0 %v1554
        %1590 = vmatprep.subr.mxu0 0.0
        %1591 = vmatpush2.msra.mxu0 0.0
        %1592 = vmatprep.subr.mxu0 0.0
        %1593 = vmatpush2.msra.mxu0 0.0
        %1594 = vmatprep.subr.mxu0 0.0
        %1595 = vmatpush2.msra.mxu0 0.0
        %1596 = vmatprep.subr.mxu0 0.0
        %1597 = vmatpush2.msra.mxu0 0.0
        %1598 = vmatprep.subr.mxu0 0.0
        %1599 = vmatpush2.msra.mxu0 0.0
        %1600 = vmatprep.subr.mxu0 0.0
        %1601 = vmatpush2.msra.mxu0 0.0
        %1602 = vmatprep.subr.mxu0 0.0
        %1603 = vmatpush2.msra.mxu0 0.0
        %1604 = vmatprep.subr.mxu0 0.0
        %1605 = vmatpush2.msra.mxu0 0.0
        %1606 = vmatprep.subr.mxu0 0.0
        %1607 = vmatpush2.msra.mxu0 0.0
        %1608 = vmatprep.subr.mxu0 0.0
        %1609 = vmatpush2.msra.mxu0 0.0
        %1610 = vmatprep.subr.mxu0 0.0
        %1611 = vmatpush2.msra.mxu0 0.0
        %1612 = vmatprep.subr.mxu0 0.0
        %1613 = vmatpush2.msra.mxu0 0.0
        %1614 = vmatprep.subr.mxu0 0.0
        %1615 = vmatpush2.msra.mxu0 0.0
        %1616 = vmatprep.subr.mxu0 0.0
        %1617 = vmatpush2.msra.mxu0 0.0
        %1618 = vmatprep.subr.mxu0 0.0
        %1619 = vmatpush2.msra.mxu0 0.0
        %1620 = vmatprep.subr.mxu0 0.0
        %1621 = vmatpush2.msra.mxu0 0.0
        %1622 = vmatprep.mubr.f32.mxu0 0.0
        %1623 = vmatmul.mubr.f32.gmra.mxu0 %v1552
        %v1624 = vpop.f32.mrf.mxu0
        %v1625 = vadd.f32 0.0, %v1624
        %v1626 = vpop.f32.mrf.mxu0
        %v1627 = vadd.f32 0.0, %v1626
        %1628 = vdwg.mxu0
        %v1629 = vadd.f32 %v1533, %v1625
        %v1630 = vadd.f32 %v1534, %v1627
        %v1633 = vcombine.low %v1629, %v1630
        %1635 = vst [vmem:[%s244] sm:$0xff] %v1633
        %s1636 = sand.u32 %s159, 1
        %s1637 = scalar_lea.sflag [#allocation3], %s1636
        %s1638 = sand.u32 %s159, 1
        %s1639 = smul.addr %s1638, 8
        %s1640 = scalar_lea.vmem [#allocation2], %s1639
        // Predicated region
        $region45: #{tpu_custom_call.1} parent=43 // pred_check
          %p1641 = pneg %p169
        $region46: #{tpu_custom_call.1} parent=43 // pred_check_branch
          %1643 = sbr.rel (%p1641) target = $region48
        $region47: #{tpu_custom_call.1} parent=43 // pred_region
          %s1645 = ssub.s32 128, 128
          %1646 = vsyncadd %s1637, %s1645
          %s1647 = smul.addr %s20, 2
          %s1648 = smul.addr %s1647, 64
          %s1649 = scalar_lea.hbm %s6, %s1648
          %s1651 = sshll.u32 %s1640, 4
          %s1652 = int_to_ptr.vmem [resolvable:$true] %s1651
          %1654 = dma.vmem_to_hbm [thread:$0]  %s1652, 128, %s1649, %s1637
        $region48: #{tpu_custom_call.1} parent=43 // pred_fallthru
          _
      $region44: #{tpu_custom_call.1} parent=5 // pred_fallthru
        _
      %p1655 = scmp.le.s32.totalorder 2, %s15
      // Predicated region
      $region49: #{tpu_custom_call.1} parent=5 // pred_check
        %p1656 = pneg %p1655
      $region50: #{tpu_custom_call.1} parent=5 // pred_check_branch
        %1658 = sbr.rel (%p1656) target = $region52
      $region51: #{tpu_custom_call.1} parent=5 // pred_region
        %s1659 = ssub.s32 %s15, 2
        // Predicated region
        $region53: #{tpu_custom_call.1} parent=51 // pred_check
          %p1660 = pneg %p175
        $region54: #{tpu_custom_call.1} parent=51 // pred_check_branch
          %1662 = sbr.rel (%p1660) target = $region56
        $region55: #{tpu_custom_call.1} parent=51 // pred_region
          %s1663 = sand.u32 %s160, 1
          %s1664 = scalar_lea.sflag [#allocation3], %s1663
          %s1665 = sand.u32 %s160, 1
          %s1666 = smul.addr %s1665, 8
          %s1667 = scalar_lea.vmem [#allocation2], %s1666
          %1668 = dma.done %s1664, 128
        $region56: #{tpu_custom_call.1} parent=51 // pred_fallthru
          _
      $region52: #{tpu_custom_call.1} parent=5 // pred_fallthru
        _
    $region6: #{tpu_custom_call.1} parent=1 // loop_footer
      %s19 = sadd.s32 1, %s15
    $region7: #{tpu_custom_call.1} parent=1 // loop_footer_branch
      %14 = sbr.rel target = $region3
    $region8: #{tpu_custom_call.1} parent=1 // loop_exit
      _
    %1669 = vsyncpa [#allocation3], 1
    %s1670 = scalar_lea.sflag [#allocation3], 1
    %1671 = vsyncpa %s1670, 1

</llo_original>
